<compile_context>
chip_gen: v6e
topology: v6e:2x2x1
jax: 0.10.0
libtpu: 0.0.40
codegen_flags: <defaults>
</compile_context>

<pallas_src>
import functools

import jax
import jax.numpy as jnp
from jax.experimental import pallas as pl
from jax.experimental.pallas import tpu as pltpu


# Row ranges of each layer inside the packed (128, 128) weight slab and the
# (128, 1) bias slab: (row_start, row_end, in_features).  All starts are
# sublane (8)-aligned.
_L1 = (0, 64, 3)
_L2 = (64, 96, 64)
_L3 = (96, 112, 32)
_HEAD = (112, 114, 16)
_SLAB_ROWS = 128
_SLAB_COLS = 128


def _reinforce_kernel(x_ref, w_ref, b_ref, out_ref, *, action_bound):
    """One batch tile of the ReinforceNet forward pass.

    x_ref:   (3,  TB)    observation tile, batch on the lane (last) axis
    w_ref:   (128, 128)  packed weight slab (VMEM-resident, constant index_map)
    b_ref:   (128, 1)    packed bias slab   (VMEM-resident, constant index_map)
    out_ref: (2,  TB)    row 0 = mean, row 1 = sigma  (lane-dense store)

    Padded batch columns (zeros) flow through the net and produce finite
    garbage that the wrapper slices off -- never read the padded region.
    """
    x = x_ref[...]                                                  # (3, TB)

    def layer(h, rows):
        r0, r1, cin = rows
        w = w_ref[r0:r1, 0:cin]          # static ref slice, no extra operand
        b = b_ref[r0:r1, :]
        return jnp.dot(w, h, preferred_element_type=jnp.float32) + b

    h = jnp.maximum(layer(x, _L1), 0.0)                             # (64, TB)
    h = jnp.maximum(layer(h, _L2), 0.0)                             # (32, TB)
    h = jnp.maximum(layer(h, _L3), 0.0)                             # (16, TB)
    # NOTE: layer 1 has contraction depth 3; replacing it with three VPU
    # broadcast multiply-adds would shorten the dependent MXU chain 4 -> 3,
    # but only pays off if the bundle dump shows the first MXU fill exposed.
    z = layer(h, _HEAD)                                             # (2, TB)

    # Row 0: mean = action_bound * tanh(z0); row 1: sigma = softplus(z1).
    # Both branches are cheap EUP work on a tiny (2, TB) tile; select by row
    # index so the output is written with a single lane-dense store.
    row = jax.lax.broadcasted_iota(jnp.int32, z.shape, 0)
    out_ref[...] = jnp.where(row == 0,
                             action_bound * jnp.tanh(z),
                             jnp.logaddexp(z, 0.0))


def pack_params(params):
    """Pack the 8 (w, b) tensors into a weight slab + bias slab (done ONCE).

    Keeps the pallas_call at 3 operands (x + 2 resident slabs) instead of 9,
    trimming per-call / per-grid-step fixed overhead on a kernel whose useful
    MXU work is nanoseconds per tile.
    """
    (w1, b1, w2, b2, w3, b3, wh, bh) = params
    wslab = jnp.zeros((_SLAB_ROWS, _SLAB_COLS), jnp.float32)
    bslab = jnp.zeros((_SLAB_ROWS, 1), jnp.float32)
    for (r0, r1, cin), w, b in ((_L1, w1, b1), (_L2, w2, b2),
                                (_L3, w3, b3), (_HEAD, wh, bh)):
        wslab = wslab.at[r0:r1, 0:cin].set(w.astype(jnp.float32))
        bslab = bslab.at[r0:r1, :].set(b.astype(jnp.float32))
    return wslab, bslab


def _num_tensorcores():
    """TensorCores reachable from one pallas_call via a 'parallel' grid axis.

    v7x (and megacore v4/v5p) expose 2 TCs per device; v5e / v6e expose 1.
    A wrong guess only changes tiling (perf), never correctness.
    """
    try:
        kind = jax.devices()[0].device_kind.lower()
    except Exception:
        return 1
    if ("v7" in kind) or ("tpu7" in kind) or ("v4" in kind) or ("v5p" in kind):
        return 2
    return 1


@functools.partial(jax.jit, static_argnames=("block_b", "action_bound"))
def reinforce_forward(x, wslab, bslab, *, block_b=1024, action_bound=2.0):
    """ReinforceNet forward.  x: (B, 3) float32 (PyTorch layout).

    Returns (mean, sigma), each (B, 1), matching the PyTorch module.
    For per-env-step RL use, batch several environments/steps per call -- at
    batch ~8 the cost is pure dispatch + weight-DMA overhead.  Callers that
    can keep observations in (3, B) layout (and consume a (2, B) slab) avoid
    even the fused pad/transpose.
    """
    B = x.shape[0]

    # --- generation-aware batch tiling --------------------------------------
    # Lane-align the batch, then: one grid step on single-TC chips (v5e/v6e),
    # or >= 2 "parallel" tiles on multi-TC chips (v7x) so both TCs get work.
    num_tc = _num_tensorcores()
    b_lane = max(128, ((B + 127) // 128) * 128)
    target = -(-b_lane // num_tc)                         # ceil(b_lane / num_tc)
    tb = min(block_b, ((target + 127) // 128) * 128)      # lane-aligned tile
    b_pad = -(-b_lane // tb) * tb                         # multiple of tb
    grid = (b_pad // tb,)

    # Pad batch and put it on the lane (last) axis: (3, b_pad).  With
    # allow_input_fusion below, XLA may fold this pad+transpose into the
    # custom call's input instead of running it as a separate fusion with its
    # own HBM round trip.
    x_t = jnp.pad(x.astype(jnp.float32), ((0, b_pad - B), (0, 0))).T

    kernel = functools.partial(_reinforce_kernel,
                               action_bound=float(action_bound))

    cost = pl.CostEstimate(
        flops=2 * b_pad * (3 * 64 + 64 * 32 + 32 * 16 + 16 * 2),
        transcendentals=6 * b_pad,          # tanh + exp + log over a (2, b_pad) tile
        bytes_accessed=4 * (int(wslab.size) + int(bslab.size)) + 4 * b_pad * (3 + 2),
    )

    out = pl.pallas_call(
        kernel,
        out_shape=jax.ShapeDtypeStruct((2, b_pad), jnp.float32),
        grid=grid,
        in_specs=[
            # x tile: walks the lane axis with the grid index.
            pl.BlockSpec((3, tb), lambda i: (0, i)),
            # Packed weights / biases: full-extent blocks with a constant
            # index_map -> fetched once, VMEM-resident across all grid steps.
            pl.BlockSpec((_SLAB_ROWS, _SLAB_COLS), lambda i: (0, 0)),
            pl.BlockSpec((_SLAB_ROWS, 1), lambda i: (0, 0)),
        ],
        out_specs=pl.BlockSpec((2, tb), lambda i: (0, i)),
        compiler_params=pltpu.CompilerParams(
            dimension_semantics=("parallel",),           # shard batch tiles (2 TCs on v7x)
            allow_input_fusion=[True, False, False],     # fold x's pad/transpose into the call
        ),
        cost_estimate=cost,
    )(x_t, wslab, bslab)

    # Single slice + transpose instead of two strided row extractions.
    res = out[:, :B].T                                   # (B, 2)
    return res[:, 0:1], res[:, 1:2]


def init_params(key):
    """PyTorch nn.Linear default init: U[-1/sqrt(fan_in), +1/sqrt(fan_in)].

    Weights kept in PyTorch's (out_features, in_features) layout, biases as
    (out_features, 1).  Mean and sigma heads are fused: wh (2, 16) / bh (2, 1)
    with row 0 = mean head, row 1 = sigma head.
    """
    def linear(k, fan_out, fan_in):
        kw, kb = jax.random.split(k)
        bound = 1.0 / float(fan_in) ** 0.5
        w = jax.random.uniform(kw, (fan_out, fan_in), jnp.float32, -bound, bound)
        b = jax.random.uniform(kb, (fan_out, 1), jnp.float32, -bound, bound)
        return w, b

    k1, k2, k3, km, ks = jax.random.split(key, 5)
    w1, b1 = linear(k1, 64, 3)
    w2, b2 = linear(k2, 32, 64)
    w3, b3 = linear(k3, 16, 32)
    wm, bm = linear(km, 1, 16)
    ws, bs = linear(ks, 1, 16)
    wh = jnp.concatenate([wm, ws], axis=0)    # (2, 16)
    bh = jnp.concatenate([bm, bs], axis=0)    # (2, 1)
    return (w1, b1, w2, b2, w3, b3, wh, bh)


def reference_forward(x, params, action_bound=2.0):
    """Pure-JAX reference (PyTorch semantics) for correctness checking."""
    (w1, b1, w2, b2, w3, b3, wh, bh) = params
    h = jnp.maximum(x @ w1.T + b1.T, 0.0)
    h = jnp.maximum(h @ w2.T + b2.T, 0.0)
    h = jnp.maximum(h @ w3.T + b3.T, 0.0)
    z = h @ wh.T + bh.T                        # (B, 2)
    mean = action_bound * jnp.tanh(z[:, 0:1])
    sig = jnp.logaddexp(z[:, 1:2], 0.0)
    return mean, sig


if __name__ == "__main__":
    key = jax.random.PRNGKey(0)
    key, kx = jax.random.split(key)

    # Pendulum observation: (cos(theta), sin(theta), theta_dot) -> 3 features.
    # batch=1000 pads to 1024: ONE 1024-wide tile on single-TC v5e/v6e, TWO
    # 512-wide "parallel" tiles on v7x (exercises the grid, resident-slab
    # index_maps, and the batch padding/slicing path).
    batch = 1000
    x = jax.random.normal(kx, (batch, 3), dtype=jnp.float32)

    params = init_params(key)
    wslab, bslab = pack_params(params)        # packed once, reused every call

    mean, sig = reinforce_forward(x, wslab, bslab)
    jax.block_until_ready((mean, sig))

    mean_ref, sig_ref = reference_forward(x, params)
    assert mean.shape == (batch, 1) and sig.shape == (batch, 1)
    assert jnp.allclose(mean, mean_ref, atol=1e-5, rtol=1e-5)
    assert jnp.allclose(sig, sig_ref, atol=1e-5, rtol=1e-5)

    # Tiny-batch path (single 128-lane tile) -- the per-env-step RL case.
    x_small = jax.random.normal(kx, (8, 3), dtype=jnp.float32)
    m_s, s_s = reinforce_forward(x_small, wslab, bslab)
    jax.block_until_ready((m_s, s_s))
    m_r, s_r = reference_forward(x_small, params)
    assert m_s.shape == (8, 1) and s_s.shape == (8, 1)
    assert jnp.allclose(m_s, m_r, atol=1e-5, rtol=1e-5)
    assert jnp.allclose(s_s, s_r, atol=1e-5, rtol=1e-5)

    print("KERNEL_OK")
</pallas_src>

<mosaic_0001>
module attributes {stable_mosaic.version = 11 : i64} {
  func.func @_reinforce_kernel(%arg0: i32, %arg1: memref<3x1024xf32, #tpu.memory_space<vmem>>, %arg2: memref<128x128xf32, #tpu.memory_space<vmem>>, %arg3: memref<128x1xf32, #tpu.memory_space<vmem>>, %arg4: memref<2x1024xf32, #tpu.memory_space<vmem>>) attributes {dimension_semantics = [#tpu.dimension_semantics<parallel>], iteration_bounds = array<i64: 1>, scalar_prefetch = 0 : i64, scratch_operands = 0 : i64, tpu.core_type = #tpu.core_type<tc>, window_params = [{transform_indices = @transform_0, window_bounds = array<i64: 3, 1024>}, {pipeline_mode = #tpu.pipeline_mode<synchronous>, transform_indices = @transform_1, window_bounds = array<i64: 128, 128>}, {pipeline_mode = #tpu.pipeline_mode<synchronous>, transform_indices = @transform_2, window_bounds = array<i64: 128, 1>}, {transform_indices = @transform_3, window_bounds = array<i64: 2, 1024>}]} {
    %c0 = arith.constant 0 : index
    %c0_0 = arith.constant 0 : index
    %0 = vector.load %arg1[%c0, %c0_0] : memref<3x1024xf32, #tpu.memory_space<vmem>>, vector<3x1024xf32>
    %c0_1 = arith.constant 0 : index
    %c0_2 = arith.constant 0 : index
    %1 = vector.load %arg2[%c0_1, %c0_2] : memref<128x128xf32, #tpu.memory_space<vmem>>, vector<64x3xf32>
    %c0_3 = arith.constant 0 : index
    %c0_4 = arith.constant 0 : index
    %2 = vector.load %arg3[%c0_3, %c0_4] : memref<128x1xf32, #tpu.memory_space<vmem>>, vector<64x1xf32>
    %cst = arith.constant dense<0.000000e+00> : vector<64x1024xf32>
    %3 = tpu.matmul %1, %0, %cst {dimension_numbers = #tpu.dot_dimension_numbers<[1], [0], [0], [1], [0, 0, 1, 1], [], []>} : vector<64x3xf32>, vector<3x1024xf32>, vector<64x1024xf32> -> vector<64x1024xf32>
    %4 = vector.broadcast %2 : vector<64x1xf32> to vector<64x1024xf32>
    %5 = arith.addf %3, %4 : vector<64x1024xf32>
    %cst_5 = arith.constant 0.000000e+00 : f32
    %6 = vector.broadcast %cst_5 : f32 to vector<64x1024xf32>
    %7 = arith.maximumf %5, %6 : vector<64x1024xf32>
    %c64 = arith.constant 64 : index
    %c0_6 = arith.constant 0 : index
    %8 = vector.load %arg2[%c64, %c0_6] : memref<128x128xf32, #tpu.memory_space<vmem>>, vector<32x64xf32>
    %c64_7 = arith.constant 64 : index
    %c0_8 = arith.constant 0 : index
    %9 = vector.load %arg3[%c64_7, %c0_8] : memref<128x1xf32, #tpu.memory_space<vmem>>, vector<32x1xf32>
    %cst_9 = arith.constant dense<0.000000e+00> : vector<32x1024xf32>
    %10 = tpu.matmul %8, %7, %cst_9 {dimension_numbers = #tpu.dot_dimension_numbers<[1], [0], [0], [1], [0, 0, 1, 1], [], []>} : vector<32x64xf32>, vector<64x1024xf32>, vector<32x1024xf32> -> vector<32x1024xf32>
    %11 = vector.broadcast %9 : vector<32x1xf32> to vector<32x1024xf32>
    %12 = arith.addf %10, %11 : vector<32x1024xf32>
    %cst_10 = arith.constant 0.000000e+00 : f32
    %13 = vector.broadcast %cst_10 : f32 to vector<32x1024xf32>
    %14 = arith.maximumf %12, %13 : vector<32x1024xf32>
    %c96 = arith.constant 96 : index
    %c0_11 = arith.constant 0 : index
    %15 = vector.load %arg2[%c96, %c0_11] : memref<128x128xf32, #tpu.memory_space<vmem>>, vector<16x32xf32>
    %c96_12 = arith.constant 96 : index
    %c0_13 = arith.constant 0 : index
    %16 = vector.load %arg3[%c96_12, %c0_13] : memref<128x1xf32, #tpu.memory_space<vmem>>, vector<16x1xf32>
    %cst_14 = arith.constant dense<0.000000e+00> : vector<16x1024xf32>
    %17 = tpu.matmul %15, %14, %cst_14 {dimension_numbers = #tpu.dot_dimension_numbers<[1], [0], [0], [1], [0, 0, 1, 1], [], []>} : vector<16x32xf32>, vector<32x1024xf32>, vector<16x1024xf32> -> vector<16x1024xf32>
    %18 = vector.broadcast %16 : vector<16x1xf32> to vector<16x1024xf32>
    %19 = arith.addf %17, %18 : vector<16x1024xf32>
    %cst_15 = arith.constant 0.000000e+00 : f32
    %20 = vector.broadcast %cst_15 : f32 to vector<16x1024xf32>
    %21 = arith.maximumf %19, %20 : vector<16x1024xf32>
    %c112 = arith.constant 112 : index
    %c0_16 = arith.constant 0 : index
    %22 = vector.load %arg2[%c112, %c0_16] : memref<128x128xf32, #tpu.memory_space<vmem>>, vector<2x16xf32>
    %c112_17 = arith.constant 112 : index
    %c0_18 = arith.constant 0 : index
    %23 = vector.load %arg3[%c112_17, %c0_18] : memref<128x1xf32, #tpu.memory_space<vmem>>, vector<2x1xf32>
    %cst_19 = arith.constant dense<0.000000e+00> : vector<2x1024xf32>
    %24 = tpu.matmul %22, %21, %cst_19 {dimension_numbers = #tpu.dot_dimension_numbers<[1], [0], [0], [1], [0, 0, 1, 1], [], []>} : vector<2x16xf32>, vector<16x1024xf32>, vector<2x1024xf32> -> vector<2x1024xf32>
    %25 = vector.broadcast %23 : vector<2x1xf32> to vector<2x1024xf32>
    %26 = arith.addf %24, %25 : vector<2x1024xf32>
    %27 = tpu.iota {dimensions = array<i32: 0>} : vector<2x1024xi32>
    %c0_i32 = arith.constant 0 : i32
    %28 = vector.broadcast %c0_i32 : i32 to vector<2x1024xi32>
    %29 = arith.cmpi eq, %27, %28 : vector<2x1024xi32>
    %30 = math.tanh %26 : vector<2x1024xf32>
    %cst_20 = arith.constant 2.000000e+00 : f32
    %31 = vector.broadcast %cst_20 : f32 to vector<2x1024xf32>
    %32 = arith.mulf %31, %30 : vector<2x1024xf32>
    %cst_21 = arith.constant 0.000000e+00 : f32
    %33 = vector.broadcast %cst_21 : f32 to vector<2x1024xf32>
    %34 = arith.maximumf %26, %33 : vector<2x1024xf32>
    %35 = vector.broadcast %cst_21 : f32 to vector<2x1024xf32>
    %36 = arith.subf %26, %35 : vector<2x1024xf32>
    %37 = arith.cmpf one, %36, %36 : vector<2x1024xf32>
    %38 = vector.broadcast %cst_21 : f32 to vector<2x1024xf32>
    %39 = arith.addf %26, %38 : vector<2x1024xf32>
    %40 = math.absf %36 : vector<2x1024xf32>
    %cst_22 = arith.constant 0.000000e+00 : f32
    %41 = vector.broadcast %cst_22 : f32 to vector<2x1024xf32>
    %42 = arith.subf %41, %40 : vector<2x1024xf32>
    %43 = math.exp %42 : vector<2x1024xf32>
    %44 = math.log1p %43 : vector<2x1024xf32>
    %45 = arith.addf %34, %44 : vector<2x1024xf32>
    %46 = arith.select %37, %39, %45 : vector<2x1024xi1>, vector<2x1024xf32>
    %47 = arith.select %29, %32, %46 : vector<2x1024xi1>, vector<2x1024xf32>
    %c0_23 = arith.constant 0 : index
    %c0_24 = arith.constant 0 : index
    %48 = vector.load %arg4[%c0_23, %c0_24] : memref<2x1024xf32, #tpu.memory_space<vmem>>, vector<2x1024xf32>
    tpu.vector_store %arg4[%c0_23, %c0_24], %47 {strides = array<i32>} : memref<2x1024xf32, #tpu.memory_space<vmem>>, vector<2x1024xf32>,
    return
  }
  func.func @transform_0(%arg0: i32) -> (i32, i32) {
    %c0_i32 = arith.constant 0 : i32
    %c0_i32_0 = arith.constant 0 : i32
    return %c0_i32, %arg0 : i32, i32
  }
  func.func @transform_1(%arg0: i32) -> (i32, i32) {
    %c0_i32 = arith.constant 0 : i32
    %c0_i32_0 = arith.constant 0 : i32
    %c0_i32_1 = arith.constant 0 : i32
    return %c0_i32, %c0_i32_0 : i32, i32
  }
  func.func @transform_2(%arg0: i32) -> (i32, i32) {
    %c0_i32 = arith.constant 0 : i32
    %c0_i32_0 = arith.constant 0 : i32
    %c0_i32_1 = arith.constant 0 : i32
    return %c0_i32, %c0_i32_0 : i32, i32
  }
  func.func @transform_3(%arg0: i32) -> (i32, i32) {
    %c0_i32 = arith.constant 0 : i32
    %c0_i32_0 = arith.constant 0 : i32
    return %c0_i32, %arg0 : i32, i32
  }
}

</mosaic_0001>

<llo_original>
// kernel: reinforce_forward.2
$region0: #{reinforce_forward.2}
  #allocation0 [shape = 'u32[]', space=smem, size = 0x4, offset = 0x4, fixed_abs, tag = 'smem constant byte address 0x4 - core index']
  #allocation1 [shape = 'u32[144,128]{1,0:T(1,128)}', space=vmem, size = 0x12000, scoped, tag = 'internal scratch']
  #allocation2 [shape = 'u32[2048]{0}', space=vmem, size = 0x2000, scoped, tag = 'scoped memory for reinforce_forward.2']
  #allocation3 [shape = 'u32[2048]{0}', space=vmem, size = 0x2000, scoped, tag = 'scoped memory for reinforce_forward.2']
  #allocation4 [shape = 'u32[2048]{0}', space=vmem, size = 0x2000, scoped, tag = 'scoped memory for reinforce_forward.2']
  #allocation5 [shape = 'u32[2048]{0}', space=vmem, size = 0x2000, scoped, tag = 'scoped memory for reinforce_forward.2']
  #allocation6 [shape = 'u32[2048]{0}', space=vmem, size = 0x2000, scoped, tag = 'scoped memory for reinforce_forward.2']
  %s0 = inlined_call_operand.vmem [shape: f32[128,128], index: 0, kind: input, shape index: {}]
  %s1 = inlined_call_operand.vmem [shape: f32[128,1], index: 1, kind: input, shape index: {}]
  %s2 = inlined_call_operand.hbm [shape: f32[1000,3], index: 2, kind: input, shape index: {}]
  %s3 = inlined_call_operand.<no memory space> [shape: f32[], index: 3, kind: input, shape index: {}]
  %s4 = inlined_call_operand.vmem [shape: f32[2,1024], index: 4, kind: output, shape index: {}]
  %s5 = sld [smem:[#allocation0]]
  $region26: #{reinforce_forward.2} parent=0
    _
  %s7 = ssub.s32 1, %s5
  %s8 = scalar_select 0, %s7, %s5
  %v9 = vstv %s3
  $region1: #{reinforce_forward.2} parent=0
    #allocation7 [shape = 'u8[16384]{0}', space=vmem, size = 0x4000, scoped, tag = 'operand span for operand 2']
    #allocation8 [shape = 's32[1]{0}', space=sflag, size = 0x4, scoped, tag = 'scoped memory for reinforce_forward.2']
    #allocation9 [shape = 'u8[16384]{0}', space=vmem, size = 0x4000, dematerialized = true, scoped, tag = 'FusionAdapter Buffer %fusion.1 = f32[3,1024]{1,0:T(4,128)} fusion(%param_2.2, %param_3), kind=kLoop, calls=%fused_computation.1.clone, metadata={op_name="jit(reinforce_forward)/transpose" stack_frame_id=8}']
    %10 = vsyncpa [#allocation8], 0
    // Predicated region
    $region2: #{reinforce_forward.2} parent=1 // pred_check
      _
    $region3: #{reinforce_forward.2} parent=1 // pred_check_branch
      %12 = sbr.rel (0) target = $region5
    $region4: #{reinforce_forward.2} parent=1 // pred_region
      %s14 = ssub.s32 512, 512
      %15 = vsyncadd [#allocation8], %s14
      %s17 = sshll.u32 [#allocation7], 4
      %s18 = int_to_ptr.vmem [resolvable:$true] %s17
      %20 = dma.hbm_to_vmem [thread:$0]  %s2, 512, %s18, [#allocation8]
    $region5: #{reinforce_forward.2} parent=1 // pred_fallthru
      _
    // Predicated region
    $region6: #{reinforce_forward.2} parent=1 // pred_check
      _
    $region7: #{reinforce_forward.2} parent=1 // pred_check_branch
      %22 = sbr.rel (0) target = $region9
    $region8: #{reinforce_forward.2} parent=1 // pred_region
      _
    $region9: #{reinforce_forward.2} parent=1 // pred_fallthru
      _
    // Predicated region
    $region10: #{reinforce_forward.2} parent=1 // pred_check
      _
    $region11: #{reinforce_forward.2} parent=1 // pred_check_branch
      %24 = sbr.rel (0) target = $region13
    $region12: #{reinforce_forward.2} parent=1 // pred_region
      _
    $region13: #{reinforce_forward.2} parent=1 // pred_fallthru
      _
    // Predicated region
    $region14: #{reinforce_forward.2} parent=1 // pred_check
      _
    $region15: #{reinforce_forward.2} parent=1 // pred_check_branch
      %26 = sbr.rel (0) target = $region17
    $region16: #{reinforce_forward.2} parent=1 // pred_region
      %27 = dma.done [#allocation8], 512
    $region17: #{reinforce_forward.2} parent=1 // pred_fallthru
      _
    %v28 = vld [vmem:[#allocation7] sm:$0x7]
    %v29 = vlaneseq
    %v30 = vshrl.u32 %v29, 7
    %vm32 = vcmp.lt.s32.totalorder %v30, 3
    %v33 = vsel %vm32, %v28, %v9
    %v34 = vlaneseq
    %v35 = vand.u32 %v34, 127
    %vm37 = vcmp.lt.s32.totalorder %v35, 1000
    %v38 = vsel %vm37, %v33, %v9
    %s40 = ssub.s32 16, 1
    %41 = vst [vmem:[#allocation9] sm:%s40] %v38
    %s42 = scalar_lea.vmem [#allocation7], 4
    %v43 = vld [vmem:[%s42] sm:$0x7]
    %v44 = vlaneseq
    %v45 = vshrl.u32 %v44, 7
    %vm47 = vcmp.lt.s32.totalorder %v45, 3
    %v48 = vsel %vm47, %v43, %v9
    %v49 = vlaneseq
    %v50 = vand.u32 %v49, 127
    %v51 = vadd.s32 %v50, 128
    %vm52 = vcmp.lt.s32.totalorder %v51, 1000
    %v53 = vsel %vm52, %v48, %v9
    %s54 = scalar_lea.vmem [#allocation9], 4
    %s56 = ssub.s32 16, 1
    %57 = vst [vmem:[%s54] sm:%s56] %v53
    %s58 = scalar_lea.vmem [#allocation7], 8
    %v59 = vld [vmem:[%s58] sm:$0x7]
    %v60 = vlaneseq
    %v61 = vshrl.u32 %v60, 7
    %vm63 = vcmp.lt.s32.totalorder %v61, 3
    %v64 = vsel %vm63, %v59, %v9
    %v65 = vlaneseq
    %v66 = vand.u32 %v65, 127
    %v67 = vadd.s32 %v66, 256
    %vm68 = vcmp.lt.s32.totalorder %v67, 1000
    %v69 = vsel %vm68, %v64, %v9
    %s70 = scalar_lea.vmem [#allocation9], 8
    %s72 = ssub.s32 16, 1
    %73 = vst [vmem:[%s70] sm:%s72] %v69
    %s74 = scalar_lea.vmem [#allocation7], 12
    %v75 = vld [vmem:[%s74] sm:$0x7]
    %v76 = vlaneseq
    %v77 = vshrl.u32 %v76, 7
    %vm79 = vcmp.lt.s32.totalorder %v77, 3
    %v80 = vsel %vm79, %v75, %v9
    %v81 = vlaneseq
    %v82 = vand.u32 %v81, 127
    %v83 = vadd.s32 %v82, 384
    %vm84 = vcmp.lt.s32.totalorder %v83, 1000
    %v85 = vsel %vm84, %v80, %v9
    %s86 = scalar_lea.vmem [#allocation9], 12
    %s88 = ssub.s32 16, 1
    %89 = vst [vmem:[%s86] sm:%s88] %v85
    %s90 = scalar_lea.vmem [#allocation7], 16
    %v91 = vld [vmem:[%s90] sm:$0x7]
    %v92 = vlaneseq
    %v93 = vshrl.u32 %v92, 7
    %vm95 = vcmp.lt.s32.totalorder %v93, 3
    %v96 = vsel %vm95, %v91, %v9
    %v97 = vlaneseq
    %v98 = vand.u32 %v97, 127
    %v99 = vadd.s32 %v98, 512
    %vm100 = vcmp.lt.s32.totalorder %v99, 1000
    %v101 = vsel %vm100, %v96, %v9
    %s102 = scalar_lea.vmem [#allocation9], 16
    %s104 = ssub.s32 16, 1
    %105 = vst [vmem:[%s102] sm:%s104] %v101
    %s106 = scalar_lea.vmem [#allocation7], 20
    %v107 = vld [vmem:[%s106] sm:$0x7]
    %v108 = vlaneseq
    %v109 = vshrl.u32 %v108, 7
    %vm111 = vcmp.lt.s32.totalorder %v109, 3
    %v112 = vsel %vm111, %v107, %v9
    %v113 = vlaneseq
    %v114 = vand.u32 %v113, 127
    %v115 = vadd.s32 %v114, 640
    %vm116 = vcmp.lt.s32.totalorder %v115, 1000
    %v117 = vsel %vm116, %v112, %v9
    %s118 = scalar_lea.vmem [#allocation9], 20
    %s120 = ssub.s32 16, 1
    %121 = vst [vmem:[%s118] sm:%s120] %v117
    %s122 = scalar_lea.vmem [#allocation7], 24
    %v123 = vld [vmem:[%s122] sm:$0x7]
    %v124 = vlaneseq
    %v125 = vshrl.u32 %v124, 7
    %vm127 = vcmp.lt.s32.totalorder %v125, 3
    %v128 = vsel %vm127, %v123, %v9
    %v129 = vlaneseq
    %v130 = vand.u32 %v129, 127
    %v131 = vadd.s32 %v130, 768
    %vm132 = vcmp.lt.s32.totalorder %v131, 1000
    %v133 = vsel %vm132, %v128, %v9
    %s134 = scalar_lea.vmem [#allocation9], 24
    %s136 = ssub.s32 16, 1
    %137 = vst [vmem:[%s134] sm:%s136] %v133
    %s138 = scalar_lea.vmem [#allocation7], 28
    %v139 = vld [vmem:[%s138] sm:$0x7]
    %v140 = vlaneseq
    %v141 = vshrl.u32 %v140, 7
    %vm143 = vcmp.lt.s32.totalorder %v141, 3
    %v144 = vsel %vm143, %v139, %v9
    %v145 = vlaneseq
    %v146 = vand.u32 %v145, 127
    %v147 = vadd.s32 %v146, 896
    %vm148 = vcmp.lt.s32.totalorder %v147, 1000
    %v149 = vsel %vm148, %v144, %v9
    %s150 = scalar_lea.vmem [#allocation9], 28
    %s152 = ssub.s32 16, 1
    %153 = vst [vmem:[%s150] sm:%s152] %v149
    %v154 = vld [vmem:[#allocation9] sm:$0x77]
    %v155 = vld [vmem:[#allocation9 + $0x8] sm:$0x77]
    %v156 = vld [vmem:[#allocation9 + $0x10] sm:$0x77]
    %v157 = vld [vmem:[#allocation9 + $0x18] sm:$0x77]
    %v158 = vld [vmem:[%s0] sm:$0xff]
    %v159 = vld [vmem:[%s0 + $0x8] sm:$0xff]
    %v160 = vld [vmem:[%s0 + $0x10] sm:$0xff]
    %v161 = vld [vmem:[%s0 + $0x18] sm:$0xff]
    %v162 = vld [vmem:[%s0 + $0x20] sm:$0xff]
    %v163 = vld [vmem:[%s0 + $0x28] sm:$0xff]
    %v164 = vld [vmem:[%s0 + $0x30] sm:$0xff]
    %v165 = vld [vmem:[%s0 + $0x38] sm:$0xff]
    %v166 = vld [vmem:[%s1] sm:$0xff]
    %v167 = vld [vmem:[%s1 + $0x8] sm:$0xff]
    %v168 = vld [vmem:[%s1 + $0x10] sm:$0xff]
    %v169 = vld [vmem:[%s1 + $0x18] sm:$0xff]
    %v170 = vld [vmem:[%s1 + $0x20] sm:$0xff]
    %v171 = vld [vmem:[%s1 + $0x28] sm:$0xff]
    %v172 = vld [vmem:[%s1 + $0x30] sm:$0xff]
    %v173 = vld [vmem:[%s1 + $0x38] sm:$0xff]
    %175 = vset.pattern.permute.xlu0 0
    %176 = vperm.xlu0 %175, %v166
    %v177 = vpop.permute.xlu0 %176
    %180 = vset.pattern.permute.xlu0 0
    %181 = vperm.xlu0 %180, %v167
    %v182 = vpop.permute.xlu0 %181
    %185 = vset.pattern.permute.xlu0 0
    %186 = vperm.xlu0 %185, %v168
    %v187 = vpop.permute.xlu0 %186
    %190 = vset.pattern.permute.xlu0 0
    %191 = vperm.xlu0 %190, %v169
    %v192 = vpop.permute.xlu0 %191
    %195 = vset.pattern.permute.xlu0 0
    %196 = vperm.xlu0 %195, %v170
    %v197 = vpop.permute.xlu0 %196
    %200 = vset.pattern.permute.xlu0 0
    %201 = vperm.xlu0 %200, %v171
    %v202 = vpop.permute.xlu0 %201
    %205 = vset.pattern.permute.xlu0 0
    %206 = vperm.xlu0 %205, %v172
    %v207 = vpop.permute.xlu0 %206
    %210 = vset.pattern.permute.xlu0 0
    %211 = vperm.xlu0 %210, %v173
    %v212 = vpop.permute.xlu0 %211
    %v218 = vcombine.high %v154, %v154
    %v219 = vcombine.high %v155, %v155
    %v220 = vcombine.high %v156, %v156
    %v221 = vcombine.high %v157, %v157
    %vm222 = vcmask 23552
    %v224 = vsel %vm222, %v158, 0
    %v227 = vsel %vm222, %v159, 0
    %v230 = vsel %vm222, %v160, 0
    %v233 = vsel %vm222, %v161, 0
    %v236 = vsel %vm222, %v162, 0
    %v239 = vsel %vm222, %v163, 0
    %v242 = vsel %vm222, %v164, 0
    %v245 = vsel %vm222, %v165, 0
    %vm247 = vcmask 1042432
    %v248 = vsel %vm247, %v154, 0
    %v250 = vsel %vm247, %v218, 0
    %v252 = vsel %vm247, %v155, 0
    %v254 = vsel %vm247, %v219, 0
    %v256 = vsel %vm247, %v156, 0
    %v258 = vsel %vm247, %v220, 0
    %v260 = vsel %vm247, %v157, 0
    %v262 = vsel %vm247, %v221, 0
    %264 = vmatprep.subr.mxu0 0.0
    %265 = vmatpush1.msra.mxu0 0.0
    %266 = vmatprep.subr.mxu0 0.0
    %267 = vmatpush1.msra.mxu0 0.0
    %268 = vmatprep.subr.mxu0 0.0
    %269 = vmatpush1.msra.mxu0 0.0
    %270 = vmatprep.subr.mxu0 0.0
    %271 = vmatpush1.msra.mxu0 0.0
    %272 = vmatprep.subr.mxu0 0.0
    %273 = vmatpush1.msra.mxu0 0.0
    %274 = vmatprep.subr.mxu0 0.0
    %275 = vmatpush1.msra.mxu0 0.0
    %276 = vmatprep.subr.mxu0 0.0
    %277 = vmatpush1.msra.mxu0 0.0
    %278 = vmatprep.subr.mxu0 0.0
    %279 = vmatpush1.msra.mxu0 0.0
    %280 = vmatprep.subr.mxu0 0.0
    %281 = vmatpush1.msra.mxu0 0.0
    %282 = vmatprep.subr.mxu0 0.0
    %283 = vmatpush1.msra.mxu0 0.0
    %284 = vmatprep.subr.mxu0 0.0
    %285 = vmatpush1.msra.mxu0 0.0
    %286 = vmatprep.subr.mxu0 0.0
    %287 = vmatpush1.msra.mxu0 0.0
    %288 = vmatprep.subr.mxu0 0.0
    %289 = vmatpush1.msra.mxu0 0.0
    %290 = vmatprep.subr.mxu0 0.0
    %291 = vmatpush1.msra.mxu0 0.0
    %292 = vmatprep.subr.mxu0 0.0
    %293 = vmatpush1.msra.mxu0 0.0
    %294 = vmatprep.subr.mxu0 %v250
    %295 = vmatpush1.msra.mxu0 %v248
    %296 = vmatprep.subr.mxu0 0.0
    %297 = vmatpush2.msra.mxu0 0.0
    %298 = vmatprep.subr.mxu0 0.0
    %299 = vmatpush2.msra.mxu0 0.0
    %300 = vmatprep.subr.mxu0 0.0
    %301 = vmatpush2.msra.mxu0 0.0
    %302 = vmatprep.subr.mxu0 0.0
    %303 = vmatpush2.msra.mxu0 0.0
    %304 = vmatprep.subr.mxu0 0.0
    %305 = vmatpush2.msra.mxu0 0.0
    %306 = vmatprep.subr.mxu0 0.0
    %307 = vmatpush2.msra.mxu0 0.0
    %308 = vmatprep.subr.mxu0 0.0
    %309 = vmatpush2.msra.mxu0 0.0
    %310 = vmatprep.subr.mxu0 0.0
    %311 = vmatpush2.msra.mxu0 0.0
    %312 = vmatprep.subr.mxu0 0.0
    %313 = vmatpush2.msra.mxu0 0.0
    %314 = vmatprep.subr.mxu0 0.0
    %315 = vmatpush2.msra.mxu0 0.0
    %316 = vmatprep.subr.mxu0 0.0
    %317 = vmatpush2.msra.mxu0 0.0
    %318 = vmatprep.subr.mxu0 0.0
    %319 = vmatpush2.msra.mxu0 0.0
    %320 = vmatprep.subr.mxu0 0.0
    %321 = vmatpush2.msra.mxu0 0.0
    %322 = vmatprep.subr.mxu0 0.0
    %323 = vmatpush2.msra.mxu0 0.0
    %324 = vmatprep.subr.mxu0 0.0
    %325 = vmatpush2.msra.mxu0 0.0
    %326 = vmatprep.subr.mxu0 0.0
    %327 = vmatpush2.msra.mxu0 0.0
    %328 = vmatprep.mubr.f32.mxu0 0.0
    %329 = vmatmul.mubr.f32.gmra.mxu0 %v224
    %v330 = vpop.f32.mrf.mxu0
    %v331 = vadd.f32 %v177, %v330
    %v332 = vpop.f32.mrf.mxu0
    %v333 = vadd.f32 %v177, %v332
    %334 = vmatprep.mubr.f32.mxu0 0.0
    %335 = vmatmul.mubr.f32.gmra.mxu0 %v227
    %v336 = vpop.f32.mrf.mxu0
    %v337 = vadd.f32 %v182, %v336
    %v338 = vpop.f32.mrf.mxu0
    %v339 = vadd.f32 %v182, %v338
    %340 = vmatprep.mubr.f32.mxu0 0.0
    %341 = vmatmul.mubr.f32.gmra.mxu0 %v230
    %v342 = vpop.f32.mrf.mxu0
    %v343 = vadd.f32 %v187, %v342
    %v344 = vpop.f32.mrf.mxu0
    %v345 = vadd.f32 %v187, %v344
    %346 = vmatprep.mubr.f32.mxu0 0.0
    %347 = vmatmul.mubr.f32.gmra.mxu0 %v233
    %v348 = vpop.f32.mrf.mxu0
    %v349 = vadd.f32 %v192, %v348
    %v350 = vpop.f32.mrf.mxu0
    %v351 = vadd.f32 %v192, %v350
    %352 = vmatprep.mubr.f32.mxu0 0.0
    %353 = vmatmul.mubr.f32.gmra.mxu0 %v236
    %v354 = vpop.f32.mrf.mxu0
    %v355 = vadd.f32 %v197, %v354
    %v356 = vpop.f32.mrf.mxu0
    %v357 = vadd.f32 %v197, %v356
    %358 = vmatprep.mubr.f32.mxu0 0.0
    %359 = vmatmul.mubr.f32.gmra.mxu0 %v239
    %v360 = vpop.f32.mrf.mxu0
    %v361 = vadd.f32 %v202, %v360
    %v362 = vpop.f32.mrf.mxu0
    %v363 = vadd.f32 %v202, %v362
    %364 = vmatprep.mubr.f32.mxu0 0.0
    %365 = vmatmul.mubr.f32.gmra.mxu0 %v242
    %v366 = vpop.f32.mrf.mxu0
    %v367 = vadd.f32 %v207, %v366
    %v368 = vpop.f32.mrf.mxu0
    %v369 = vadd.f32 %v207, %v368
    %370 = vmatprep.mubr.f32.mxu0 0.0
    %371 = vmatmul.mubr.f32.gmra.mxu0 %v245
    %v372 = vpop.f32.mrf.mxu0
    %v373 = vadd.f32 %v212, %v372
    %v374 = vpop.f32.mrf.mxu0
    %v375 = vadd.f32 %v212, %v374
    %376 = vdwg.mxu0
    %377 = vmatprep.subr.mxu0 0.0
    %378 = vmatpush1.msra.mxu0 0.0
    %379 = vmatprep.subr.mxu0 0.0
    %380 = vmatpush1.msra.mxu0 0.0
    %381 = vmatprep.subr.mxu0 0.0
    %382 = vmatpush1.msra.mxu0 0.0
    %383 = vmatprep.subr.mxu0 0.0
    %384 = vmatpush1.msra.mxu0 0.0
    %385 = vmatprep.subr.mxu0 0.0
    %386 = vmatpush1.msra.mxu0 0.0
    %387 = vmatprep.subr.mxu0 0.0
    %388 = vmatpush1.msra.mxu0 0.0
    %389 = vmatprep.subr.mxu0 0.0
    %390 = vmatpush1.msra.mxu0 0.0
    %391 = vmatprep.subr.mxu0 0.0
    %392 = vmatpush1.msra.mxu0 0.0
    %393 = vmatprep.subr.mxu0 0.0
    %394 = vmatpush1.msra.mxu0 0.0
    %395 = vmatprep.subr.mxu0 0.0
    %396 = vmatpush1.msra.mxu0 0.0
    %397 = vmatprep.subr.mxu0 0.0
    %398 = vmatpush1.msra.mxu0 0.0
    %399 = vmatprep.subr.mxu0 0.0
    %400 = vmatpush1.msra.mxu0 0.0
    %401 = vmatprep.subr.mxu0 0.0
    %402 = vmatpush1.msra.mxu0 0.0
    %403 = vmatprep.subr.mxu0 0.0
    %404 = vmatpush1.msra.mxu0 0.0
    %405 = vmatprep.subr.mxu0 0.0
    %406 = vmatpush1.msra.mxu0 0.0
    %407 = vmatprep.subr.mxu0 %v254
    %408 = vmatpush1.msra.mxu0 %v252
    %409 = vmatprep.subr.mxu0 0.0
    %410 = vmatpush2.msra.mxu0 0.0
    %411 = vmatprep.subr.mxu0 0.0
    %412 = vmatpush2.msra.mxu0 0.0
    %413 = vmatprep.subr.mxu0 0.0
    %414 = vmatpush2.msra.mxu0 0.0
    %415 = vmatprep.subr.mxu0 0.0
    %416 = vmatpush2.msra.mxu0 0.0
    %417 = vmatprep.subr.mxu0 0.0
    %418 = vmatpush2.msra.mxu0 0.0
    %419 = vmatprep.subr.mxu0 0.0
    %420 = vmatpush2.msra.mxu0 0.0
    %421 = vmatprep.subr.mxu0 0.0
    %422 = vmatpush2.msra.mxu0 0.0
    %423 = vmatprep.subr.mxu0 0.0
    %424 = vmatpush2.msra.mxu0 0.0
    %425 = vmatprep.subr.mxu0 0.0
    %426 = vmatpush2.msra.mxu0 0.0
    %427 = vmatprep.subr.mxu0 0.0
    %428 = vmatpush2.msra.mxu0 0.0
    %429 = vmatprep.subr.mxu0 0.0
    %430 = vmatpush2.msra.mxu0 0.0
    %431 = vmatprep.subr.mxu0 0.0
    %432 = vmatpush2.msra.mxu0 0.0
    %433 = vmatprep.subr.mxu0 0.0
    %434 = vmatpush2.msra.mxu0 0.0
    %435 = vmatprep.subr.mxu0 0.0
    %436 = vmatpush2.msra.mxu0 0.0
    %437 = vmatprep.subr.mxu0 0.0
    %438 = vmatpush2.msra.mxu0 0.0
    %439 = vmatprep.subr.mxu0 0.0
    %440 = vmatpush2.msra.mxu0 0.0
    %441 = vmatprep.mubr.f32.mxu0 0.0
    %442 = vmatmul.mubr.f32.gmra.mxu0 %v224
    %v443 = vpop.f32.mrf.mxu0
    %v444 = vadd.f32 %v177, %v443
    %v445 = vpop.f32.mrf.mxu0
    %v446 = vadd.f32 %v177, %v445
    %447 = vmatprep.mubr.f32.mxu0 0.0
    %448 = vmatmul.mubr.f32.gmra.mxu0 %v227
    %v449 = vpop.f32.mrf.mxu0
    %v450 = vadd.f32 %v182, %v449
    %v451 = vpop.f32.mrf.mxu0
    %v452 = vadd.f32 %v182, %v451
    %453 = vmatprep.mubr.f32.mxu0 0.0
    %454 = vmatmul.mubr.f32.gmra.mxu0 %v230
    %v455 = vpop.f32.mrf.mxu0
    %v456 = vadd.f32 %v187, %v455
    %v457 = vpop.f32.mrf.mxu0
    %v458 = vadd.f32 %v187, %v457
    %459 = vmatprep.mubr.f32.mxu0 0.0
    %460 = vmatmul.mubr.f32.gmra.mxu0 %v233
    %v461 = vpop.f32.mrf.mxu0
    %v462 = vadd.f32 %v192, %v461
    %v463 = vpop.f32.mrf.mxu0
    %v464 = vadd.f32 %v192, %v463
    %465 = vmatprep.mubr.f32.mxu0 0.0
    %466 = vmatmul.mubr.f32.gmra.mxu0 %v236
    %v467 = vpop.f32.mrf.mxu0
    %v468 = vadd.f32 %v197, %v467
    %v469 = vpop.f32.mrf.mxu0
    %v470 = vadd.f32 %v197, %v469
    %471 = vmatprep.mubr.f32.mxu0 0.0
    %472 = vmatmul.mubr.f32.gmra.mxu0 %v239
    %v473 = vpop.f32.mrf.mxu0
    %v474 = vadd.f32 %v202, %v473
    %v475 = vpop.f32.mrf.mxu0
    %v476 = vadd.f32 %v202, %v475
    %477 = vmatprep.mubr.f32.mxu0 0.0
    %478 = vmatmul.mubr.f32.gmra.mxu0 %v242
    %v479 = vpop.f32.mrf.mxu0
    %v480 = vadd.f32 %v207, %v479
    %v481 = vpop.f32.mrf.mxu0
    %v482 = vadd.f32 %v207, %v481
    %483 = vmatprep.mubr.f32.mxu0 0.0
    %484 = vmatmul.mubr.f32.gmra.mxu0 %v245
    %v485 = vpop.f32.mrf.mxu0
    %v486 = vadd.f32 %v212, %v485
    %v487 = vpop.f32.mrf.mxu0
    %v488 = vadd.f32 %v212, %v487
    %489 = vdwg.mxu0
    %490 = vmatprep.subr.mxu0 0.0
    %491 = vmatpush1.msra.mxu0 0.0
    %492 = vmatprep.subr.mxu0 0.0
    %493 = vmatpush1.msra.mxu0 0.0
    %494 = vmatprep.subr.mxu0 0.0
    %495 = vmatpush1.msra.mxu0 0.0
    %496 = vmatprep.subr.mxu0 0.0
    %497 = vmatpush1.msra.mxu0 0.0
    %498 = vmatprep.subr.mxu0 0.0
    %499 = vmatpush1.msra.mxu0 0.0
    %500 = vmatprep.subr.mxu0 0.0
    %501 = vmatpush1.msra.mxu0 0.0
    %502 = vmatprep.subr.mxu0 0.0
    %503 = vmatpush1.msra.mxu0 0.0
    %504 = vmatprep.subr.mxu0 0.0
    %505 = vmatpush1.msra.mxu0 0.0
    %506 = vmatprep.subr.mxu0 0.0
    %507 = vmatpush1.msra.mxu0 0.0
    %508 = vmatprep.subr.mxu0 0.0
    %509 = vmatpush1.msra.mxu0 0.0
    %510 = vmatprep.subr.mxu0 0.0
    %511 = vmatpush1.msra.mxu0 0.0
    %512 = vmatprep.subr.mxu0 0.0
    %513 = vmatpush1.msra.mxu0 0.0
    %514 = vmatprep.subr.mxu0 0.0
    %515 = vmatpush1.msra.mxu0 0.0
    %516 = vmatprep.subr.mxu0 0.0
    %517 = vmatpush1.msra.mxu0 0.0
    %518 = vmatprep.subr.mxu0 0.0
    %519 = vmatpush1.msra.mxu0 0.0
    %520 = vmatprep.subr.mxu0 %v258
    %521 = vmatpush1.msra.mxu0 %v256
    %522 = vmatprep.subr.mxu0 0.0
    %523 = vmatpush2.msra.mxu0 0.0
    %524 = vmatprep.subr.mxu0 0.0
    %525 = vmatpush2.msra.mxu0 0.0
    %526 = vmatprep.subr.mxu0 0.0
    %527 = vmatpush2.msra.mxu0 0.0
    %528 = vmatprep.subr.mxu0 0.0
    %529 = vmatpush2.msra.mxu0 0.0
    %530 = vmatprep.subr.mxu0 0.0
    %531 = vmatpush2.msra.mxu0 0.0
    %532 = vmatprep.subr.mxu0 0.0
    %533 = vmatpush2.msra.mxu0 0.0
    %534 = vmatprep.subr.mxu0 0.0
    %535 = vmatpush2.msra.mxu0 0.0
    %536 = vmatprep.subr.mxu0 0.0
    %537 = vmatpush2.msra.mxu0 0.0
    %538 = vmatprep.subr.mxu0 0.0
    %539 = vmatpush2.msra.mxu0 0.0
    %540 = vmatprep.subr.mxu0 0.0
    %541 = vmatpush2.msra.mxu0 0.0
    %542 = vmatprep.subr.mxu0 0.0
    %543 = vmatpush2.msra.mxu0 0.0
    %544 = vmatprep.subr.mxu0 0.0
    %545 = vmatpush2.msra.mxu0 0.0
    %546 = vmatprep.subr.mxu0 0.0
    %547 = vmatpush2.msra.mxu0 0.0
    %548 = vmatprep.subr.mxu0 0.0
    %549 = vmatpush2.msra.mxu0 0.0
    %550 = vmatprep.subr.mxu0 0.0
    %551 = vmatpush2.msra.mxu0 0.0
    %552 = vmatprep.subr.mxu0 0.0
    %553 = vmatpush2.msra.mxu0 0.0
    %554 = vmatprep.mubr.f32.mxu0 0.0
    %555 = vmatmul.mubr.f32.gmra.mxu0 %v224
    %v556 = vpop.f32.mrf.mxu0
    %v557 = vadd.f32 %v177, %v556
    %v558 = vpop.f32.mrf.mxu0
    %v559 = vadd.f32 %v177, %v558
    %560 = vmatprep.mubr.f32.mxu0 0.0
    %561 = vmatmul.mubr.f32.gmra.mxu0 %v227
    %v562 = vpop.f32.mrf.mxu0
    %v563 = vadd.f32 %v182, %v562
    %v564 = vpop.f32.mrf.mxu0
    %v565 = vadd.f32 %v182, %v564
    %566 = vmatprep.mubr.f32.mxu0 0.0
    %567 = vmatmul.mubr.f32.gmra.mxu0 %v230
    %v568 = vpop.f32.mrf.mxu0
    %v569 = vadd.f32 %v187, %v568
    %v570 = vpop.f32.mrf.mxu0
    %v571 = vadd.f32 %v187, %v570
    %572 = vmatprep.mubr.f32.mxu0 0.0
    %573 = vmatmul.mubr.f32.gmra.mxu0 %v233
    %v574 = vpop.f32.mrf.mxu0
    %v575 = vadd.f32 %v192, %v574
    %v576 = vpop.f32.mrf.mxu0
    %v577 = vadd.f32 %v192, %v576
    %578 = vmatprep.mubr.f32.mxu0 0.0
    %579 = vmatmul.mubr.f32.gmra.mxu0 %v236
    %v580 = vpop.f32.mrf.mxu0
    %v581 = vadd.f32 %v197, %v580
    %v582 = vpop.f32.mrf.mxu0
    %v583 = vadd.f32 %v197, %v582
    %584 = vmatprep.mubr.f32.mxu0 0.0
    %585 = vmatmul.mubr.f32.gmra.mxu0 %v239
    %v586 = vpop.f32.mrf.mxu0
    %v587 = vadd.f32 %v202, %v586
    %v588 = vpop.f32.mrf.mxu0
    %v589 = vadd.f32 %v202, %v588
    %590 = vmatprep.mubr.f32.mxu0 0.0
    %591 = vmatmul.mubr.f32.gmra.mxu0 %v242
    %v592 = vpop.f32.mrf.mxu0
    %v593 = vadd.f32 %v207, %v592
    %v594 = vpop.f32.mrf.mxu0
    %v595 = vadd.f32 %v207, %v594
    %596 = vmatprep.mubr.f32.mxu0 0.0
    %597 = vmatmul.mubr.f32.gmra.mxu0 %v245
    %v598 = vpop.f32.mrf.mxu0
    %v599 = vadd.f32 %v212, %v598
    %v600 = vpop.f32.mrf.mxu0
    %v601 = vadd.f32 %v212, %v600
    %602 = vdwg.mxu0
    %603 = vmatprep.subr.mxu0 0.0
    %604 = vmatpush1.msra.mxu0 0.0
    %605 = vmatprep.subr.mxu0 0.0
    %606 = vmatpush1.msra.mxu0 0.0
    %607 = vmatprep.subr.mxu0 0.0
    %608 = vmatpush1.msra.mxu0 0.0
    %609 = vmatprep.subr.mxu0 0.0
    %610 = vmatpush1.msra.mxu0 0.0
    %611 = vmatprep.subr.mxu0 0.0
    %612 = vmatpush1.msra.mxu0 0.0
    %613 = vmatprep.subr.mxu0 0.0
    %614 = vmatpush1.msra.mxu0 0.0
    %615 = vmatprep.subr.mxu0 0.0
    %616 = vmatpush1.msra.mxu0 0.0
    %617 = vmatprep.subr.mxu0 0.0
    %618 = vmatpush1.msra.mxu0 0.0
    %619 = vmatprep.subr.mxu0 0.0
    %620 = vmatpush1.msra.mxu0 0.0
    %621 = vmatprep.subr.mxu0 0.0
    %622 = vmatpush1.msra.mxu0 0.0
    %623 = vmatprep.subr.mxu0 0.0
    %624 = vmatpush1.msra.mxu0 0.0
    %625 = vmatprep.subr.mxu0 0.0
    %626 = vmatpush1.msra.mxu0 0.0
    %627 = vmatprep.subr.mxu0 0.0
    %628 = vmatpush1.msra.mxu0 0.0
    %629 = vmatprep.subr.mxu0 0.0
    %630 = vmatpush1.msra.mxu0 0.0
    %631 = vmatprep.subr.mxu0 0.0
    %632 = vmatpush1.msra.mxu0 0.0
    %633 = vmatprep.subr.mxu0 %v262
    %634 = vmatpush1.msra.mxu0 %v260
    %635 = vmatprep.subr.mxu0 0.0
    %636 = vmatpush2.msra.mxu0 0.0
    %637 = vmatprep.subr.mxu0 0.0
    %638 = vmatpush2.msra.mxu0 0.0
    %639 = vmatprep.subr.mxu0 0.0
    %640 = vmatpush2.msra.mxu0 0.0
    %641 = vmatprep.subr.mxu0 0.0
    %642 = vmatpush2.msra.mxu0 0.0
    %643 = vmatprep.subr.mxu0 0.0
    %644 = vmatpush2.msra.mxu0 0.0
    %645 = vmatprep.subr.mxu0 0.0
    %646 = vmatpush2.msra.mxu0 0.0
    %647 = vmatprep.subr.mxu0 0.0
    %648 = vmatpush2.msra.mxu0 0.0
    %649 = vmatprep.subr.mxu0 0.0
    %650 = vmatpush2.msra.mxu0 0.0
    %651 = vmatprep.subr.mxu0 0.0
    %652 = vmatpush2.msra.mxu0 0.0
    %653 = vmatprep.subr.mxu0 0.0
    %654 = vmatpush2.msra.mxu0 0.0
    %655 = vmatprep.subr.mxu0 0.0
    %656 = vmatpush2.msra.mxu0 0.0
    %657 = vmatprep.subr.mxu0 0.0
    %658 = vmatpush2.msra.mxu0 0.0
    %659 = vmatprep.subr.mxu0 0.0
    %660 = vmatpush2.msra.mxu0 0.0
    %661 = vmatprep.subr.mxu0 0.0
    %662 = vmatpush2.msra.mxu0 0.0
    %663 = vmatprep.subr.mxu0 0.0
    %664 = vmatpush2.msra.mxu0 0.0
    %665 = vmatprep.subr.mxu0 0.0
    %666 = vmatpush2.msra.mxu0 0.0
    %667 = vmatprep.mubr.f32.mxu0 0.0
    %668 = vmatmul.mubr.f32.gmra.mxu0 %v224
    %v669 = vpop.f32.mrf.mxu0
    %v670 = vadd.f32 %v177, %v669
    %v671 = vpop.f32.mrf.mxu0
    %v672 = vadd.f32 %v177, %v671
    %673 = vmatprep.mubr.f32.mxu0 0.0
    %674 = vmatmul.mubr.f32.gmra.mxu0 %v227
    %v675 = vpop.f32.mrf.mxu0
    %v676 = vadd.f32 %v182, %v675
    %v677 = vpop.f32.mrf.mxu0
    %v678 = vadd.f32 %v182, %v677
    %679 = vmatprep.mubr.f32.mxu0 0.0
    %680 = vmatmul.mubr.f32.gmra.mxu0 %v230
    %v681 = vpop.f32.mrf.mxu0
    %v682 = vadd.f32 %v187, %v681
    %v683 = vpop.f32.mrf.mxu0
    %v684 = vadd.f32 %v187, %v683
    %685 = vmatprep.mubr.f32.mxu0 0.0
    %686 = vmatmul.mubr.f32.gmra.mxu0 %v233
    %v687 = vpop.f32.mrf.mxu0
    %v688 = vadd.f32 %v192, %v687
    %v689 = vpop.f32.mrf.mxu0
    %v690 = vadd.f32 %v192, %v689
    %691 = vmatprep.mubr.f32.mxu0 0.0
    %692 = vmatmul.mubr.f32.gmra.mxu0 %v236
    %v693 = vpop.f32.mrf.mxu0
    %v694 = vadd.f32 %v197, %v693
    %v695 = vpop.f32.mrf.mxu0
    %v696 = vadd.f32 %v197, %v695
    %697 = vmatprep.mubr.f32.mxu0 0.0
    %698 = vmatmul.mubr.f32.gmra.mxu0 %v239
    %v699 = vpop.f32.mrf.mxu0
    %v700 = vadd.f32 %v202, %v699
    %v701 = vpop.f32.mrf.mxu0
    %v702 = vadd.f32 %v202, %v701
    %703 = vmatprep.mubr.f32.mxu0 0.0
    %704 = vmatmul.mubr.f32.gmra.mxu0 %v242
    %v705 = vpop.f32.mrf.mxu0
    %v706 = vadd.f32 %v207, %v705
    %v707 = vpop.f32.mrf.mxu0
    %v708 = vadd.f32 %v207, %v707
    %709 = vmatprep.mubr.f32.mxu0 0.0
    %710 = vmatmul.mubr.f32.gmra.mxu0 %v245
    %v711 = vpop.f32.mrf.mxu0
    %v712 = vadd.f32 %v212, %v711
    %v713 = vpop.f32.mrf.mxu0
    %v714 = vadd.f32 %v212, %v713
    %715 = vdwg.mxu0
    %v716 = vmax.f32 %v331, 0.0
    %v717 = vmax.f32 %v333, 0.0
    %v718 = vmax.f32 %v444, 0.0
    %v719 = vmax.f32 %v446, 0.0
    %v720 = vmax.f32 %v557, 0.0
    %v721 = vmax.f32 %v559, 0.0
    %v722 = vmax.f32 %v670, 0.0
    %v723 = vmax.f32 %v672, 0.0
    %v724 = vmax.f32 %v337, 0.0
    %v725 = vmax.f32 %v339, 0.0
    %v726 = vmax.f32 %v450, 0.0
    %v727 = vmax.f32 %v452, 0.0
    %v728 = vmax.f32 %v563, 0.0
    %v729 = vmax.f32 %v565, 0.0
    %v730 = vmax.f32 %v676, 0.0
    %v731 = vmax.f32 %v678, 0.0
    %v732 = vmax.f32 %v343, 0.0
    %v733 = vmax.f32 %v345, 0.0
    %v734 = vmax.f32 %v456, 0.0
    %v735 = vmax.f32 %v458, 0.0
    %v736 = vmax.f32 %v569, 0.0
    %v737 = vmax.f32 %v571, 0.0
    %v738 = vmax.f32 %v682, 0.0
    %v739 = vmax.f32 %v684, 0.0
    %v740 = vmax.f32 %v349, 0.0
    %v741 = vmax.f32 %v351, 0.0
    %v742 = vmax.f32 %v462, 0.0
    %v743 = vmax.f32 %v464, 0.0
    %v744 = vmax.f32 %v575, 0.0
    %v745 = vmax.f32 %v577, 0.0
    %v746 = vmax.f32 %v688, 0.0
    %v747 = vmax.f32 %v690, 0.0
    %v748 = vmax.f32 %v355, 0.0
    %v749 = vmax.f32 %v357, 0.0
    %v750 = vmax.f32 %v468, 0.0
    %v751 = vmax.f32 %v470, 0.0
    %v752 = vmax.f32 %v581, 0.0
    %v753 = vmax.f32 %v583, 0.0
    %v754 = vmax.f32 %v694, 0.0
    %v755 = vmax.f32 %v696, 0.0
    %v756 = vmax.f32 %v361, 0.0
    %v757 = vmax.f32 %v363, 0.0
    %v758 = vmax.f32 %v474, 0.0
    %v759 = vmax.f32 %v476, 0.0
    %v760 = vmax.f32 %v587, 0.0
    %v761 = vmax.f32 %v589, 0.0
    %v762 = vmax.f32 %v700, 0.0
    %v763 = vmax.f32 %v702, 0.0
    %v764 = vmax.f32 %v367, 0.0
    %v765 = vmax.f32 %v369, 0.0
    %v766 = vmax.f32 %v480, 0.0
    %v767 = vmax.f32 %v482, 0.0
    %v768 = vmax.f32 %v593, 0.0
    %v769 = vmax.f32 %v595, 0.0
    %v770 = vmax.f32 %v706, 0.0
    %v771 = vmax.f32 %v708, 0.0
    %v772 = vmax.f32 %v373, 0.0
    %v773 = vmax.f32 %v375, 0.0
    %v774 = vmax.f32 %v486, 0.0
    %v775 = vmax.f32 %v488, 0.0
    %v776 = vmax.f32 %v599, 0.0
    %v777 = vmax.f32 %v601, 0.0
    %v778 = vmax.f32 %v712, 0.0
    %v779 = vmax.f32 %v714, 0.0
    %v780 = vld [vmem:[%s0 + $0x40] sm:$0xff]
    %v781 = vld [vmem:[%s0 + $0x48] sm:$0xff]
    %v782 = vld [vmem:[%s0 + $0x50] sm:$0xff]
    %v783 = vld [vmem:[%s0 + $0x58] sm:$0xff]
    %v784 = vld [vmem:[%s1 + $0x40] sm:$0xff]
    %v785 = vld [vmem:[%s1 + $0x48] sm:$0xff]
    %v786 = vld [vmem:[%s1 + $0x50] sm:$0xff]
    %v787 = vld [vmem:[%s1 + $0x58] sm:$0xff]
    %789 = vset.pattern.permute.xlu0 0
    %790 = vperm.xlu0 %789, %v784
    %v791 = vpop.permute.xlu0 %790
    %794 = vset.pattern.permute.xlu0 0
    %795 = vperm.xlu0 %794, %v785
    %v796 = vpop.permute.xlu0 %795
    %799 = vset.pattern.permute.xlu0 0
    %800 = vperm.xlu0 %799, %v786
    %v801 = vpop.permute.xlu0 %800
    %804 = vset.pattern.permute.xlu0 0
    %805 = vperm.xlu0 %804, %v787
    %v806 = vpop.permute.xlu0 %805
    %vm808 = vcmask 523264
    %v810 = vsel %vm808, %v780, 0
    %v813 = vsel %vm808, %v781, 0
    %v816 = vsel %vm808, %v782, 0
    %v819 = vsel %vm808, %v783, 0
    %821 = vmatprep.subr.mxu0 0.0
    %822 = vmatpush1.msra.mxu0 0.0
    %823 = vmatprep.subr.mxu0 0.0
    %824 = vmatpush1.msra.mxu0 0.0
    %825 = vmatprep.subr.mxu0 0.0
    %826 = vmatpush1.msra.mxu0 0.0
    %827 = vmatprep.subr.mxu0 0.0
    %828 = vmatpush1.msra.mxu0 0.0
    %829 = vmatprep.subr.mxu0 0.0
    %830 = vmatpush1.msra.mxu0 0.0
    %831 = vmatprep.subr.mxu0 0.0
    %832 = vmatpush1.msra.mxu0 0.0
    %833 = vmatprep.subr.mxu0 0.0
    %834 = vmatpush1.msra.mxu0 0.0
    %835 = vmatprep.subr.mxu0 0.0
    %836 = vmatpush1.msra.mxu0 0.0
    %837 = vmatprep.subr.mxu0 %v773
    %838 = vmatpush1.msra.mxu0 %v772
    %839 = vmatprep.subr.mxu0 %v765
    %840 = vmatpush1.msra.mxu0 %v764
    %841 = vmatprep.subr.mxu0 %v757
    %842 = vmatpush1.msra.mxu0 %v756
    %843 = vmatprep.subr.mxu0 %v749
    %844 = vmatpush1.msra.mxu0 %v748
    %845 = vmatprep.subr.mxu0 %v741
    %846 = vmatpush1.msra.mxu0 %v740
    %847 = vmatprep.subr.mxu0 %v733
    %848 = vmatpush1.msra.mxu0 %v732
    %849 = vmatprep.subr.mxu0 %v725
    %850 = vmatpush1.msra.mxu0 %v724
    %851 = vmatprep.subr.mxu0 %v717
    %852 = vmatpush1.msra.mxu0 %v716
    %853 = vmatprep.subr.mxu0 0.0
    %854 = vmatpush2.msra.mxu0 0.0
    %855 = vmatprep.subr.mxu0 0.0
    %856 = vmatpush2.msra.mxu0 0.0
    %857 = vmatprep.subr.mxu0 0.0
    %858 = vmatpush2.msra.mxu0 0.0
    %859 = vmatprep.subr.mxu0 0.0
    %860 = vmatpush2.msra.mxu0 0.0
    %861 = vmatprep.subr.mxu0 0.0
    %862 = vmatpush2.msra.mxu0 0.0
    %863 = vmatprep.subr.mxu0 0.0
    %864 = vmatpush2.msra.mxu0 0.0
    %865 = vmatprep.subr.mxu0 0.0
    %866 = vmatpush2.msra.mxu0 0.0
    %867 = vmatprep.subr.mxu0 0.0
    %868 = vmatpush2.msra.mxu0 0.0
    %869 = vmatprep.subr.mxu0 0.0
    %870 = vmatpush2.msra.mxu0 0.0
    %871 = vmatprep.subr.mxu0 0.0
    %872 = vmatpush2.msra.mxu0 0.0
    %873 = vmatprep.subr.mxu0 0.0
    %874 = vmatpush2.msra.mxu0 0.0
    %875 = vmatprep.subr.mxu0 0.0
    %876 = vmatpush2.msra.mxu0 0.0
    %877 = vmatprep.subr.mxu0 0.0
    %878 = vmatpush2.msra.mxu0 0.0
    %879 = vmatprep.subr.mxu0 0.0
    %880 = vmatpush2.msra.mxu0 0.0
    %881 = vmatprep.subr.mxu0 0.0
    %882 = vmatpush2.msra.mxu0 0.0
    %883 = vmatprep.subr.mxu0 0.0
    %884 = vmatpush2.msra.mxu0 0.0
    %885 = vmatprep.mubr.f32.mxu0 0.0
    %886 = vmatmul.mubr.f32.gmra.mxu0 %v810
    %v887 = vpop.f32.mrf.mxu0
    %v888 = vadd.f32 %v791, %v887
    %v889 = vpop.f32.mrf.mxu0
    %v890 = vadd.f32 %v791, %v889
    %891 = vmatprep.mubr.f32.mxu0 0.0
    %892 = vmatmul.mubr.f32.gmra.mxu0 %v813
    %v893 = vpop.f32.mrf.mxu0
    %v894 = vadd.f32 %v796, %v893
    %v895 = vpop.f32.mrf.mxu0
    %v896 = vadd.f32 %v796, %v895
    %897 = vmatprep.mubr.f32.mxu0 0.0
    %898 = vmatmul.mubr.f32.gmra.mxu0 %v816
    %v899 = vpop.f32.mrf.mxu0
    %v900 = vadd.f32 %v801, %v899
    %v901 = vpop.f32.mrf.mxu0
    %v902 = vadd.f32 %v801, %v901
    %903 = vmatprep.mubr.f32.mxu0 0.0
    %904 = vmatmul.mubr.f32.gmra.mxu0 %v819
    %v905 = vpop.f32.mrf.mxu0
    %v906 = vadd.f32 %v806, %v905
    %v907 = vpop.f32.mrf.mxu0
    %v908 = vadd.f32 %v806, %v907
    %909 = vdwg.mxu0
    %910 = vmatprep.subr.mxu0 0.0
    %911 = vmatpush1.msra.mxu0 0.0
    %912 = vmatprep.subr.mxu0 0.0
    %913 = vmatpush1.msra.mxu0 0.0
    %914 = vmatprep.subr.mxu0 0.0
    %915 = vmatpush1.msra.mxu0 0.0
    %916 = vmatprep.subr.mxu0 0.0
    %917 = vmatpush1.msra.mxu0 0.0
    %918 = vmatprep.subr.mxu0 0.0
    %919 = vmatpush1.msra.mxu0 0.0
    %920 = vmatprep.subr.mxu0 0.0
    %921 = vmatpush1.msra.mxu0 0.0
    %922 = vmatprep.subr.mxu0 0.0
    %923 = vmatpush1.msra.mxu0 0.0
    %924 = vmatprep.subr.mxu0 0.0
    %925 = vmatpush1.msra.mxu0 0.0
    %926 = vmatprep.subr.mxu0 %v775
    %927 = vmatpush1.msra.mxu0 %v774
    %928 = vmatprep.subr.mxu0 %v767
    %929 = vmatpush1.msra.mxu0 %v766
    %930 = vmatprep.subr.mxu0 %v759
    %931 = vmatpush1.msra.mxu0 %v758
    %932 = vmatprep.subr.mxu0 %v751
    %933 = vmatpush1.msra.mxu0 %v750
    %934 = vmatprep.subr.mxu0 %v743
    %935 = vmatpush1.msra.mxu0 %v742
    %936 = vmatprep.subr.mxu0 %v735
    %937 = vmatpush1.msra.mxu0 %v734
    %938 = vmatprep.subr.mxu0 %v727
    %939 = vmatpush1.msra.mxu0 %v726
    %940 = vmatprep.subr.mxu0 %v719
    %941 = vmatpush1.msra.mxu0 %v718
    %942 = vmatprep.subr.mxu0 0.0
    %943 = vmatpush2.msra.mxu0 0.0
    %944 = vmatprep.subr.mxu0 0.0
    %945 = vmatpush2.msra.mxu0 0.0
    %946 = vmatprep.subr.mxu0 0.0
    %947 = vmatpush2.msra.mxu0 0.0
    %948 = vmatprep.subr.mxu0 0.0
    %949 = vmatpush2.msra.mxu0 0.0
    %950 = vmatprep.subr.mxu0 0.0
    %951 = vmatpush2.msra.mxu0 0.0
    %952 = vmatprep.subr.mxu0 0.0
    %953 = vmatpush2.msra.mxu0 0.0
    %954 = vmatprep.subr.mxu0 0.0
    %955 = vmatpush2.msra.mxu0 0.0
    %956 = vmatprep.subr.mxu0 0.0
    %957 = vmatpush2.msra.mxu0 0.0
    %958 = vmatprep.subr.mxu0 0.0
    %959 = vmatpush2.msra.mxu0 0.0
    %960 = vmatprep.subr.mxu0 0.0
    %961 = vmatpush2.msra.mxu0 0.0
    %962 = vmatprep.subr.mxu0 0.0
    %963 = vmatpush2.msra.mxu0 0.0
    %964 = vmatprep.subr.mxu0 0.0
    %965 = vmatpush2.msra.mxu0 0.0
    %966 = vmatprep.subr.mxu0 0.0
    %967 = vmatpush2.msra.mxu0 0.0
    %968 = vmatprep.subr.mxu0 0.0
    %969 = vmatpush2.msra.mxu0 0.0
    %970 = vmatprep.subr.mxu0 0.0
    %971 = vmatpush2.msra.mxu0 0.0
    %972 = vmatprep.subr.mxu0 0.0
    %973 = vmatpush2.msra.mxu0 0.0
    %974 = vmatprep.mubr.f32.mxu0 0.0
    %975 = vmatmul.mubr.f32.gmra.mxu0 %v810
    %v976 = vpop.f32.mrf.mxu0
    %v977 = vadd.f32 %v791, %v976
    %v978 = vpop.f32.mrf.mxu0
    %v979 = vadd.f32 %v791, %v978
    %980 = vmatprep.mubr.f32.mxu0 0.0
    %981 = vmatmul.mubr.f32.gmra.mxu0 %v813
    %v982 = vpop.f32.mrf.mxu0
    %v983 = vadd.f32 %v796, %v982
    %v984 = vpop.f32.mrf.mxu0
    %v985 = vadd.f32 %v796, %v984
    %986 = vmatprep.mubr.f32.mxu0 0.0
    %987 = vmatmul.mubr.f32.gmra.mxu0 %v816
    %v988 = vpop.f32.mrf.mxu0
    %v989 = vadd.f32 %v801, %v988
    %v990 = vpop.f32.mrf.mxu0
    %v991 = vadd.f32 %v801, %v990
    %992 = vmatprep.mubr.f32.mxu0 0.0
    %993 = vmatmul.mubr.f32.gmra.mxu0 %v819
    %v994 = vpop.f32.mrf.mxu0
    %v995 = vadd.f32 %v806, %v994
    %v996 = vpop.f32.mrf.mxu0
    %v997 = vadd.f32 %v806, %v996
    %998 = vdwg.mxu0
    %999 = vmatprep.subr.mxu0 0.0
    %1000 = vmatpush1.msra.mxu0 0.0
    %1001 = vmatprep.subr.mxu0 0.0
    %1002 = vmatpush1.msra.mxu0 0.0
    %1003 = vmatprep.subr.mxu0 0.0
    %1004 = vmatpush1.msra.mxu0 0.0
    %1005 = vmatprep.subr.mxu0 0.0
    %1006 = vmatpush1.msra.mxu0 0.0
    %1007 = vmatprep.subr.mxu0 0.0
    %1008 = vmatpush1.msra.mxu0 0.0
    %1009 = vmatprep.subr.mxu0 0.0
    %1010 = vmatpush1.msra.mxu0 0.0
    %1011 = vmatprep.subr.mxu0 0.0
    %1012 = vmatpush1.msra.mxu0 0.0
    %1013 = vmatprep.subr.mxu0 0.0
    %1014 = vmatpush1.msra.mxu0 0.0
    %1015 = vmatprep.subr.mxu0 %v777
    %1016 = vmatpush1.msra.mxu0 %v776
    %1017 = vmatprep.subr.mxu0 %v769
    %1018 = vmatpush1.msra.mxu0 %v768
    %1019 = vmatprep.subr.mxu0 %v761
    %1020 = vmatpush1.msra.mxu0 %v760
    %1021 = vmatprep.subr.mxu0 %v753
    %1022 = vmatpush1.msra.mxu0 %v752
    %1023 = vmatprep.subr.mxu0 %v745
    %1024 = vmatpush1.msra.mxu0 %v744
    %1025 = vmatprep.subr.mxu0 %v737
    %1026 = vmatpush1.msra.mxu0 %v736
    %1027 = vmatprep.subr.mxu0 %v729
    %1028 = vmatpush1.msra.mxu0 %v728
    %1029 = vmatprep.subr.mxu0 %v721
    %1030 = vmatpush1.msra.mxu0 %v720
    %1031 = vmatprep.subr.mxu0 0.0
    %1032 = vmatpush2.msra.mxu0 0.0
    %1033 = vmatprep.subr.mxu0 0.0
    %1034 = vmatpush2.msra.mxu0 0.0
    %1035 = vmatprep.subr.mxu0 0.0
    %1036 = vmatpush2.msra.mxu0 0.0
    %1037 = vmatprep.subr.mxu0 0.0
    %1038 = vmatpush2.msra.mxu0 0.0
    %1039 = vmatprep.subr.mxu0 0.0
    %1040 = vmatpush2.msra.mxu0 0.0
    %1041 = vmatprep.subr.mxu0 0.0
    %1042 = vmatpush2.msra.mxu0 0.0
    %1043 = vmatprep.subr.mxu0 0.0
    %1044 = vmatpush2.msra.mxu0 0.0
    %1045 = vmatprep.subr.mxu0 0.0
    %1046 = vmatpush2.msra.mxu0 0.0
    %1047 = vmatprep.subr.mxu0 0.0
    %1048 = vmatpush2.msra.mxu0 0.0
    %1049 = vmatprep.subr.mxu0 0.0
    %1050 = vmatpush2.msra.mxu0 0.0
    %1051 = vmatprep.subr.mxu0 0.0
    %1052 = vmatpush2.msra.mxu0 0.0
    %1053 = vmatprep.subr.mxu0 0.0
    %1054 = vmatpush2.msra.mxu0 0.0
    %1055 = vmatprep.subr.mxu0 0.0
    %1056 = vmatpush2.msra.mxu0 0.0
    %1057 = vmatprep.subr.mxu0 0.0
    %1058 = vmatpush2.msra.mxu0 0.0
    %1059 = vmatprep.subr.mxu0 0.0
    %1060 = vmatpush2.msra.mxu0 0.0
    %1061 = vmatprep.subr.mxu0 0.0
    %1062 = vmatpush2.msra.mxu0 0.0
    %1063 = vmatprep.mubr.f32.mxu0 0.0
    %1064 = vmatmul.mubr.f32.gmra.mxu0 %v810
    %v1065 = vpop.f32.mrf.mxu0
    %v1066 = vadd.f32 %v791, %v1065
    %v1067 = vpop.f32.mrf.mxu0
    %v1068 = vadd.f32 %v791, %v1067
    %1069 = vmatprep.mubr.f32.mxu0 0.0
    %1070 = vmatmul.mubr.f32.gmra.mxu0 %v813
    %v1071 = vpop.f32.mrf.mxu0
    %v1072 = vadd.f32 %v796, %v1071
    %v1073 = vpop.f32.mrf.mxu0
    %v1074 = vadd.f32 %v796, %v1073
    %1075 = vmatprep.mubr.f32.mxu0 0.0
    %1076 = vmatmul.mubr.f32.gmra.mxu0 %v816
    %v1077 = vpop.f32.mrf.mxu0
    %v1078 = vadd.f32 %v801, %v1077
    %v1079 = vpop.f32.mrf.mxu0
    %v1080 = vadd.f32 %v801, %v1079
    %1081 = vmatprep.mubr.f32.mxu0 0.0
    %1082 = vmatmul.mubr.f32.gmra.mxu0 %v819
    %v1083 = vpop.f32.mrf.mxu0
    %v1084 = vadd.f32 %v806, %v1083
    %v1085 = vpop.f32.mrf.mxu0
    %v1086 = vadd.f32 %v806, %v1085
    %1087 = vdwg.mxu0
    %1088 = vmatprep.subr.mxu0 0.0
    %1089 = vmatpush1.msra.mxu0 0.0
    %1090 = vmatprep.subr.mxu0 0.0
    %1091 = vmatpush1.msra.mxu0 0.0
    %1092 = vmatprep.subr.mxu0 0.0
    %1093 = vmatpush1.msra.mxu0 0.0
    %1094 = vmatprep.subr.mxu0 0.0
    %1095 = vmatpush1.msra.mxu0 0.0
    %1096 = vmatprep.subr.mxu0 0.0
    %1097 = vmatpush1.msra.mxu0 0.0
    %1098 = vmatprep.subr.mxu0 0.0
    %1099 = vmatpush1.msra.mxu0 0.0
    %1100 = vmatprep.subr.mxu0 0.0
    %1101 = vmatpush1.msra.mxu0 0.0
    %1102 = vmatprep.subr.mxu0 0.0
    %1103 = vmatpush1.msra.mxu0 0.0
    %1104 = vmatprep.subr.mxu0 %v779
    %1105 = vmatpush1.msra.mxu0 %v778
    %1106 = vmatprep.subr.mxu0 %v771
    %1107 = vmatpush1.msra.mxu0 %v770
    %1108 = vmatprep.subr.mxu0 %v763
    %1109 = vmatpush1.msra.mxu0 %v762
    %1110 = vmatprep.subr.mxu0 %v755
    %1111 = vmatpush1.msra.mxu0 %v754
    %1112 = vmatprep.subr.mxu0 %v747
    %1113 = vmatpush1.msra.mxu0 %v746
    %1114 = vmatprep.subr.mxu0 %v739
    %1115 = vmatpush1.msra.mxu0 %v738
    %1116 = vmatprep.subr.mxu0 %v731
    %1117 = vmatpush1.msra.mxu0 %v730
    %1118 = vmatprep.subr.mxu0 %v723
    %1119 = vmatpush1.msra.mxu0 %v722
    %1120 = vmatprep.subr.mxu0 0.0
    %1121 = vmatpush2.msra.mxu0 0.0
    %1122 = vmatprep.subr.mxu0 0.0
    %1123 = vmatpush2.msra.mxu0 0.0
    %1124 = vmatprep.subr.mxu0 0.0
    %1125 = vmatpush2.msra.mxu0 0.0
    %1126 = vmatprep.subr.mxu0 0.0
    %1127 = vmatpush2.msra.mxu0 0.0
    %1128 = vmatprep.subr.mxu0 0.0
    %1129 = vmatpush2.msra.mxu0 0.0
    %1130 = vmatprep.subr.mxu0 0.0
    %1131 = vmatpush2.msra.mxu0 0.0
    %1132 = vmatprep.subr.mxu0 0.0
    %1133 = vmatpush2.msra.mxu0 0.0
    %1134 = vmatprep.subr.mxu0 0.0
    %1135 = vmatpush2.msra.mxu0 0.0
    %1136 = vmatprep.subr.mxu0 0.0
    %1137 = vmatpush2.msra.mxu0 0.0
    %1138 = vmatprep.subr.mxu0 0.0
    %1139 = vmatpush2.msra.mxu0 0.0
    %1140 = vmatprep.subr.mxu0 0.0
    %1141 = vmatpush2.msra.mxu0 0.0
    %1142 = vmatprep.subr.mxu0 0.0
    %1143 = vmatpush2.msra.mxu0 0.0
    %1144 = vmatprep.subr.mxu0 0.0
    %1145 = vmatpush2.msra.mxu0 0.0
    %1146 = vmatprep.subr.mxu0 0.0
    %1147 = vmatpush2.msra.mxu0 0.0
    %1148 = vmatprep.subr.mxu0 0.0
    %1149 = vmatpush2.msra.mxu0 0.0
    %1150 = vmatprep.subr.mxu0 0.0
    %1151 = vmatpush2.msra.mxu0 0.0
    %1152 = vmatprep.mubr.f32.mxu0 0.0
    %1153 = vmatmul.mubr.f32.gmra.mxu0 %v810
    %v1154 = vpop.f32.mrf.mxu0
    %v1155 = vadd.f32 %v791, %v1154
    %v1156 = vpop.f32.mrf.mxu0
    %v1157 = vadd.f32 %v791, %v1156
    %1158 = vmatprep.mubr.f32.mxu0 0.0
    %1159 = vmatmul.mubr.f32.gmra.mxu0 %v813
    %v1160 = vpop.f32.mrf.mxu0
    %v1161 = vadd.f32 %v796, %v1160
    %v1162 = vpop.f32.mrf.mxu0
    %v1163 = vadd.f32 %v796, %v1162
    %1164 = vmatprep.mubr.f32.mxu0 0.0
    %1165 = vmatmul.mubr.f32.gmra.mxu0 %v816
    %v1166 = vpop.f32.mrf.mxu0
    %v1167 = vadd.f32 %v801, %v1166
    %v1168 = vpop.f32.mrf.mxu0
    %v1169 = vadd.f32 %v801, %v1168
    %1170 = vmatprep.mubr.f32.mxu0 0.0
    %1171 = vmatmul.mubr.f32.gmra.mxu0 %v819
    %v1172 = vpop.f32.mrf.mxu0
    %v1173 = vadd.f32 %v806, %v1172
    %v1174 = vpop.f32.mrf.mxu0
    %v1175 = vadd.f32 %v806, %v1174
    %1176 = vdwg.mxu0
    %v1177 = vmax.f32 %v888, 0.0
    %v1178 = vmax.f32 %v890, 0.0
    %v1179 = vmax.f32 %v977, 0.0
    %v1180 = vmax.f32 %v979, 0.0
    %v1181 = vmax.f32 %v1066, 0.0
    %v1182 = vmax.f32 %v1068, 0.0
    %v1183 = vmax.f32 %v1155, 0.0
    %v1184 = vmax.f32 %v1157, 0.0
    %v1185 = vmax.f32 %v894, 0.0
    %v1186 = vmax.f32 %v896, 0.0
    %v1187 = vmax.f32 %v983, 0.0
    %v1188 = vmax.f32 %v985, 0.0
    %v1189 = vmax.f32 %v1072, 0.0
    %v1190 = vmax.f32 %v1074, 0.0
    %v1191 = vmax.f32 %v1161, 0.0
    %v1192 = vmax.f32 %v1163, 0.0
    %v1193 = vmax.f32 %v900, 0.0
    %v1194 = vmax.f32 %v902, 0.0
    %v1195 = vmax.f32 %v989, 0.0
    %v1196 = vmax.f32 %v991, 0.0
    %v1197 = vmax.f32 %v1078, 0.0
    %v1198 = vmax.f32 %v1080, 0.0
    %v1199 = vmax.f32 %v1167, 0.0
    %v1200 = vmax.f32 %v1169, 0.0
    %v1201 = vmax.f32 %v906, 0.0
    %v1202 = vmax.f32 %v908, 0.0
    %v1203 = vmax.f32 %v995, 0.0
    %v1204 = vmax.f32 %v997, 0.0
    %v1205 = vmax.f32 %v1084, 0.0
    %v1206 = vmax.f32 %v1086, 0.0
    %v1207 = vmax.f32 %v1173, 0.0
    %v1208 = vmax.f32 %v1175, 0.0
    %v1209 = vld [vmem:[%s0 + $0x60] sm:$0xff]
    %v1210 = vld [vmem:[%s0 + $0x68] sm:$0xff]
    %v1211 = vld [vmem:[%s1 + $0x60] sm:$0xff]
    %v1212 = vld [vmem:[%s1 + $0x68] sm:$0xff]
    %1214 = vset.pattern.permute.xlu0 0
    %1215 = vperm.xlu0 %1214, %v1211
    %v1216 = vpop.permute.xlu0 %1215
    %1219 = vset.pattern.permute.xlu0 0
    %1220 = vperm.xlu0 %1219, %v1212
    %v1221 = vpop.permute.xlu0 %1220
    %vm1223 = vcmask 261120
    %v1225 = vsel %vm1223, %v1209, 0
    %v1228 = vsel %vm1223, %v1210, 0
    %1230 = vmatprep.subr.mxu0 0.0
    %1231 = vmatpush1.msra.mxu0 0.0
    %1232 = vmatprep.subr.mxu0 0.0
    %1233 = vmatpush1.msra.mxu0 0.0
    %1234 = vmatprep.subr.mxu0 0.0
    %1235 = vmatpush1.msra.mxu0 0.0
    %1236 = vmatprep.subr.mxu0 0.0
    %1237 = vmatpush1.msra.mxu0 0.0
    %1238 = vmatprep.subr.mxu0 0.0
    %1239 = vmatpush1.msra.mxu0 0.0
    %1240 = vmatprep.subr.mxu0 0.0
    %1241 = vmatpush1.msra.mxu0 0.0
    %1242 = vmatprep.subr.mxu0 0.0
    %1243 = vmatpush1.msra.mxu0 0.0
    %1244 = vmatprep.subr.mxu0 0.0
    %1245 = vmatpush1.msra.mxu0 0.0
    %1246 = vmatprep.subr.mxu0 0.0
    %1247 = vmatpush1.msra.mxu0 0.0
    %1248 = vmatprep.subr.mxu0 0.0
    %1249 = vmatpush1.msra.mxu0 0.0
    %1250 = vmatprep.subr.mxu0 0.0
    %1251 = vmatpush1.msra.mxu0 0.0
    %1252 = vmatprep.subr.mxu0 0.0
    %1253 = vmatpush1.msra.mxu0 0.0
    %1254 = vmatprep.subr.mxu0 %v1202
    %1255 = vmatpush1.msra.mxu0 %v1201
    %1256 = vmatprep.subr.mxu0 %v1194
    %1257 = vmatpush1.msra.mxu0 %v1193
    %1258 = vmatprep.subr.mxu0 %v1186
    %1259 = vmatpush1.msra.mxu0 %v1185
    %1260 = vmatprep.subr.mxu0 %v1178
    %1261 = vmatpush1.msra.mxu0 %v1177
    %1262 = vmatprep.subr.mxu0 0.0
    %1263 = vmatpush2.msra.mxu0 0.0
    %1264 = vmatprep.subr.mxu0 0.0
    %1265 = vmatpush2.msra.mxu0 0.0
    %1266 = vmatprep.subr.mxu0 0.0
    %1267 = vmatpush2.msra.mxu0 0.0
    %1268 = vmatprep.subr.mxu0 0.0
    %1269 = vmatpush2.msra.mxu0 0.0
    %1270 = vmatprep.subr.mxu0 0.0
    %1271 = vmatpush2.msra.mxu0 0.0
    %1272 = vmatprep.subr.mxu0 0.0
    %1273 = vmatpush2.msra.mxu0 0.0
    %1274 = vmatprep.subr.mxu0 0.0
    %1275 = vmatpush2.msra.mxu0 0.0
    %1276 = vmatprep.subr.mxu0 0.0
    %1277 = vmatpush2.msra.mxu0 0.0
    %1278 = vmatprep.subr.mxu0 0.0
    %1279 = vmatpush2.msra.mxu0 0.0
    %1280 = vmatprep.subr.mxu0 0.0
    %1281 = vmatpush2.msra.mxu0 0.0
    %1282 = vmatprep.subr.mxu0 0.0
    %1283 = vmatpush2.msra.mxu0 0.0
    %1284 = vmatprep.subr.mxu0 0.0
    %1285 = vmatpush2.msra.mxu0 0.0
    %1286 = vmatprep.subr.mxu0 0.0
    %1287 = vmatpush2.msra.mxu0 0.0
    %1288 = vmatprep.subr.mxu0 0.0
    %1289 = vmatpush2.msra.mxu0 0.0
    %1290 = vmatprep.subr.mxu0 0.0
    %1291 = vmatpush2.msra.mxu0 0.0
    %1292 = vmatprep.subr.mxu0 0.0
    %1293 = vmatpush2.msra.mxu0 0.0
    %1294 = vmatprep.mubr.f32.mxu0 0.0
    %1295 = vmatmul.mubr.f32.gmra.mxu0 %v1225
    %v1296 = vpop.f32.mrf.mxu0
    %v1297 = vadd.f32 %v1216, %v1296
    %v1298 = vpop.f32.mrf.mxu0
    %v1299 = vadd.f32 %v1216, %v1298
    %1300 = vmatprep.mubr.f32.mxu0 0.0
    %1301 = vmatmul.mubr.f32.gmra.mxu0 %v1228
    %v1302 = vpop.f32.mrf.mxu0
    %v1303 = vadd.f32 %v1221, %v1302
    %v1304 = vpop.f32.mrf.mxu0
    %v1305 = vadd.f32 %v1221, %v1304
    %1306 = vdwg.mxu0
    %1307 = vmatprep.subr.mxu0 0.0
    %1308 = vmatpush1.msra.mxu0 0.0
    %1309 = vmatprep.subr.mxu0 0.0
    %1310 = vmatpush1.msra.mxu0 0.0
    %1311 = vmatprep.subr.mxu0 0.0
    %1312 = vmatpush1.msra.mxu0 0.0
    %1313 = vmatprep.subr.mxu0 0.0
    %1314 = vmatpush1.msra.mxu0 0.0
    %1315 = vmatprep.subr.mxu0 0.0
    %1316 = vmatpush1.msra.mxu0 0.0
    %1317 = vmatprep.subr.mxu0 0.0
    %1318 = vmatpush1.msra.mxu0 0.0
    %1319 = vmatprep.subr.mxu0 0.0
    %1320 = vmatpush1.msra.mxu0 0.0
    %1321 = vmatprep.subr.mxu0 0.0
    %1322 = vmatpush1.msra.mxu0 0.0
    %1323 = vmatprep.subr.mxu0 0.0
    %1324 = vmatpush1.msra.mxu0 0.0
    %1325 = vmatprep.subr.mxu0 0.0
    %1326 = vmatpush1.msra.mxu0 0.0
    %1327 = vmatprep.subr.mxu0 0.0
    %1328 = vmatpush1.msra.mxu0 0.0
    %1329 = vmatprep.subr.mxu0 0.0
    %1330 = vmatpush1.msra.mxu0 0.0
    %1331 = vmatprep.subr.mxu0 %v1204
    %1332 = vmatpush1.msra.mxu0 %v1203
    %1333 = vmatprep.subr.mxu0 %v1196
    %1334 = vmatpush1.msra.mxu0 %v1195
    %1335 = vmatprep.subr.mxu0 %v1188
    %1336 = vmatpush1.msra.mxu0 %v1187
    %1337 = vmatprep.subr.mxu0 %v1180
    %1338 = vmatpush1.msra.mxu0 %v1179
    %1339 = vmatprep.subr.mxu0 0.0
    %1340 = vmatpush2.msra.mxu0 0.0
    %1341 = vmatprep.subr.mxu0 0.0
    %1342 = vmatpush2.msra.mxu0 0.0
    %1343 = vmatprep.subr.mxu0 0.0
    %1344 = vmatpush2.msra.mxu0 0.0
    %1345 = vmatprep.subr.mxu0 0.0
    %1346 = vmatpush2.msra.mxu0 0.0
    %1347 = vmatprep.subr.mxu0 0.0
    %1348 = vmatpush2.msra.mxu0 0.0
    %1349 = vmatprep.subr.mxu0 0.0
    %1350 = vmatpush2.msra.mxu0 0.0
    %1351 = vmatprep.subr.mxu0 0.0
    %1352 = vmatpush2.msra.mxu0 0.0
    %1353 = vmatprep.subr.mxu0 0.0
    %1354 = vmatpush2.msra.mxu0 0.0
    %1355 = vmatprep.subr.mxu0 0.0
    %1356 = vmatpush2.msra.mxu0 0.0
    %1357 = vmatprep.subr.mxu0 0.0
    %1358 = vmatpush2.msra.mxu0 0.0
    %1359 = vmatprep.subr.mxu0 0.0
    %1360 = vmatpush2.msra.mxu0 0.0
    %1361 = vmatprep.subr.mxu0 0.0
    %1362 = vmatpush2.msra.mxu0 0.0
    %1363 = vmatprep.subr.mxu0 0.0
    %1364 = vmatpush2.msra.mxu0 0.0
    %1365 = vmatprep.subr.mxu0 0.0
    %1366 = vmatpush2.msra.mxu0 0.0
    %1367 = vmatprep.subr.mxu0 0.0
    %1368 = vmatpush2.msra.mxu0 0.0
    %1369 = vmatprep.subr.mxu0 0.0
    %1370 = vmatpush2.msra.mxu0 0.0
    %1371 = vmatprep.mubr.f32.mxu0 0.0
    %1372 = vmatmul.mubr.f32.gmra.mxu0 %v1225
    %v1373 = vpop.f32.mrf.mxu0
    %v1374 = vadd.f32 %v1216, %v1373
    %v1375 = vpop.f32.mrf.mxu0
    %v1376 = vadd.f32 %v1216, %v1375
    %1377 = vmatprep.mubr.f32.mxu0 0.0
    %1378 = vmatmul.mubr.f32.gmra.mxu0 %v1228
    %v1379 = vpop.f32.mrf.mxu0
    %v1380 = vadd.f32 %v1221, %v1379
    %v1381 = vpop.f32.mrf.mxu0
    %v1382 = vadd.f32 %v1221, %v1381
    %1383 = vdwg.mxu0
    %1384 = vmatprep.subr.mxu0 0.0
    %1385 = vmatpush1.msra.mxu0 0.0
    %1386 = vmatprep.subr.mxu0 0.0
    %1387 = vmatpush1.msra.mxu0 0.0
    %1388 = vmatprep.subr.mxu0 0.0
    %1389 = vmatpush1.msra.mxu0 0.0
    %1390 = vmatprep.subr.mxu0 0.0
    %1391 = vmatpush1.msra.mxu0 0.0
    %1392 = vmatprep.subr.mxu0 0.0
    %1393 = vmatpush1.msra.mxu0 0.0
    %1394 = vmatprep.subr.mxu0 0.0
    %1395 = vmatpush1.msra.mxu0 0.0
    %1396 = vmatprep.subr.mxu0 0.0
    %1397 = vmatpush1.msra.mxu0 0.0
    %1398 = vmatprep.subr.mxu0 0.0
    %1399 = vmatpush1.msra.mxu0 0.0
    %1400 = vmatprep.subr.mxu0 0.0
    %1401 = vmatpush1.msra.mxu0 0.0
    %1402 = vmatprep.subr.mxu0 0.0
    %1403 = vmatpush1.msra.mxu0 0.0
    %1404 = vmatprep.subr.mxu0 0.0
    %1405 = vmatpush1.msra.mxu0 0.0
    %1406 = vmatprep.subr.mxu0 0.0
    %1407 = vmatpush1.msra.mxu0 0.0
    %1408 = vmatprep.subr.mxu0 %v1206
    %1409 = vmatpush1.msra.mxu0 %v1205
    %1410 = vmatprep.subr.mxu0 %v1198
    %1411 = vmatpush1.msra.mxu0 %v1197
    %1412 = vmatprep.subr.mxu0 %v1190
    %1413 = vmatpush1.msra.mxu0 %v1189
    %1414 = vmatprep.subr.mxu0 %v1182
    %1415 = vmatpush1.msra.mxu0 %v1181
    %1416 = vmatprep.subr.mxu0 0.0
    %1417 = vmatpush2.msra.mxu0 0.0
    %1418 = vmatprep.subr.mxu0 0.0
    %1419 = vmatpush2.msra.mxu0 0.0
    %1420 = vmatprep.subr.mxu0 0.0
    %1421 = vmatpush2.msra.mxu0 0.0
    %1422 = vmatprep.subr.mxu0 0.0
    %1423 = vmatpush2.msra.mxu0 0.0
    %1424 = vmatprep.subr.mxu0 0.0
    %1425 = vmatpush2.msra.mxu0 0.0
    %1426 = vmatprep.subr.mxu0 0.0
    %1427 = vmatpush2.msra.mxu0 0.0
    %1428 = vmatprep.subr.mxu0 0.0
    %1429 = vmatpush2.msra.mxu0 0.0
    %1430 = vmatprep.subr.mxu0 0.0
    %1431 = vmatpush2.msra.mxu0 0.0
    %1432 = vmatprep.subr.mxu0 0.0
    %1433 = vmatpush2.msra.mxu0 0.0
    %1434 = vmatprep.subr.mxu0 0.0
    %1435 = vmatpush2.msra.mxu0 0.0
    %1436 = vmatprep.subr.mxu0 0.0
    %1437 = vmatpush2.msra.mxu0 0.0
    %1438 = vmatprep.subr.mxu0 0.0
    %1439 = vmatpush2.msra.mxu0 0.0
    %1440 = vmatprep.subr.mxu0 0.0
    %1441 = vmatpush2.msra.mxu0 0.0
    %1442 = vmatprep.subr.mxu0 0.0
    %1443 = vmatpush2.msra.mxu0 0.0
    %1444 = vmatprep.subr.mxu0 0.0
    %1445 = vmatpush2.msra.mxu0 0.0
    %1446 = vmatprep.subr.mxu0 0.0
    %1447 = vmatpush2.msra.mxu0 0.0
    %1448 = vmatprep.mubr.f32.mxu0 0.0
    %1449 = vmatmul.mubr.f32.gmra.mxu0 %v1225
    %v1450 = vpop.f32.mrf.mxu0
    %v1451 = vadd.f32 %v1216, %v1450
    %v1452 = vpop.f32.mrf.mxu0
    %v1453 = vadd.f32 %v1216, %v1452
    %1454 = vmatprep.mubr.f32.mxu0 0.0
    %1455 = vmatmul.mubr.f32.gmra.mxu0 %v1228
    %v1456 = vpop.f32.mrf.mxu0
    %v1457 = vadd.f32 %v1221, %v1456
    %v1458 = vpop.f32.mrf.mxu0
    %v1459 = vadd.f32 %v1221, %v1458
    %1460 = vdwg.mxu0
    %1461 = vmatprep.subr.mxu0 0.0
    %1462 = vmatpush1.msra.mxu0 0.0
    %1463 = vmatprep.subr.mxu0 0.0
    %1464 = vmatpush1.msra.mxu0 0.0
    %1465 = vmatprep.subr.mxu0 0.0
    %1466 = vmatpush1.msra.mxu0 0.0
    %1467 = vmatprep.subr.mxu0 0.0
    %1468 = vmatpush1.msra.mxu0 0.0
    %1469 = vmatprep.subr.mxu0 0.0
    %1470 = vmatpush1.msra.mxu0 0.0
    %1471 = vmatprep.subr.mxu0 0.0
    %1472 = vmatpush1.msra.mxu0 0.0
    %1473 = vmatprep.subr.mxu0 0.0
    %1474 = vmatpush1.msra.mxu0 0.0
    %1475 = vmatprep.subr.mxu0 0.0
    %1476 = vmatpush1.msra.mxu0 0.0
    %1477 = vmatprep.subr.mxu0 0.0
    %1478 = vmatpush1.msra.mxu0 0.0
    %1479 = vmatprep.subr.mxu0 0.0
    %1480 = vmatpush1.msra.mxu0 0.0
    %1481 = vmatprep.subr.mxu0 0.0
    %1482 = vmatpush1.msra.mxu0 0.0
    %1483 = vmatprep.subr.mxu0 0.0
    %1484 = vmatpush1.msra.mxu0 0.0
    %1485 = vmatprep.subr.mxu0 %v1208
    %1486 = vmatpush1.msra.mxu0 %v1207
    %1487 = vmatprep.subr.mxu0 %v1200
    %1488 = vmatpush1.msra.mxu0 %v1199
    %1489 = vmatprep.subr.mxu0 %v1192
    %1490 = vmatpush1.msra.mxu0 %v1191
    %1491 = vmatprep.subr.mxu0 %v1184
    %1492 = vmatpush1.msra.mxu0 %v1183
    %1493 = vmatprep.subr.mxu0 0.0
    %1494 = vmatpush2.msra.mxu0 0.0
    %1495 = vmatprep.subr.mxu0 0.0
    %1496 = vmatpush2.msra.mxu0 0.0
    %1497 = vmatprep.subr.mxu0 0.0
    %1498 = vmatpush2.msra.mxu0 0.0
    %1499 = vmatprep.subr.mxu0 0.0
    %1500 = vmatpush2.msra.mxu0 0.0
    %1501 = vmatprep.subr.mxu0 0.0
    %1502 = vmatpush2.msra.mxu0 0.0
    %1503 = vmatprep.subr.mxu0 0.0
    %1504 = vmatpush2.msra.mxu0 0.0
    %1505 = vmatprep.subr.mxu0 0.0
    %1506 = vmatpush2.msra.mxu0 0.0
    %1507 = vmatprep.subr.mxu0 0.0
    %1508 = vmatpush2.msra.mxu0 0.0
    %1509 = vmatprep.subr.mxu0 0.0
    %1510 = vmatpush2.msra.mxu0 0.0
    %1511 = vmatprep.subr.mxu0 0.0
    %1512 = vmatpush2.msra.mxu0 0.0
    %1513 = vmatprep.subr.mxu0 0.0
    %1514 = vmatpush2.msra.mxu0 0.0
    %1515 = vmatprep.subr.mxu0 0.0
    %1516 = vmatpush2.msra.mxu0 0.0
    %1517 = vmatprep.subr.mxu0 0.0
    %1518 = vmatpush2.msra.mxu0 0.0
    %1519 = vmatprep.subr.mxu0 0.0
    %1520 = vmatpush2.msra.mxu0 0.0
    %1521 = vmatprep.subr.mxu0 0.0
    %1522 = vmatpush2.msra.mxu0 0.0
    %1523 = vmatprep.subr.mxu0 0.0
    %1524 = vmatpush2.msra.mxu0 0.0
    %1525 = vmatprep.mubr.f32.mxu0 0.0
    %1526 = vmatmul.mubr.f32.gmra.mxu0 %v1225
    %v1527 = vpop.f32.mrf.mxu0
    %v1528 = vadd.f32 %v1216, %v1527
    %v1529 = vpop.f32.mrf.mxu0
    %v1530 = vadd.f32 %v1216, %v1529
    %1531 = vmatprep.mubr.f32.mxu0 0.0
    %1532 = vmatmul.mubr.f32.gmra.mxu0 %v1228
    %v1533 = vpop.f32.mrf.mxu0
    %v1534 = vadd.f32 %v1221, %v1533
    %v1535 = vpop.f32.mrf.mxu0
    %v1536 = vadd.f32 %v1221, %v1535
    %1537 = vdwg.mxu0
    %v1538 = vmax.f32 %v1297, 0.0
    %v1539 = vmax.f32 %v1299, 0.0
    %v1540 = vmax.f32 %v1374, 0.0
    %v1541 = vmax.f32 %v1376, 0.0
    %v1542 = vmax.f32 %v1451, 0.0
    %v1543 = vmax.f32 %v1453, 0.0
    %v1544 = vmax.f32 %v1528, 0.0
    %v1545 = vmax.f32 %v1530, 0.0
    %v1546 = vmax.f32 %v1303, 0.0
    %v1547 = vmax.f32 %v1305, 0.0
    %v1548 = vmax.f32 %v1380, 0.0
    %v1549 = vmax.f32 %v1382, 0.0
    %v1550 = vmax.f32 %v1457, 0.0
    %v1551 = vmax.f32 %v1459, 0.0
    %v1552 = vmax.f32 %v1534, 0.0
    %v1553 = vmax.f32 %v1536, 0.0
    %v1554 = vld [vmem:[%s0 + $0x70] sm:$0x3]
    %v1555 = vld [vmem:[%s1 + $0x70] sm:$0x3]
    %1557 = vset.pattern.permute.xlu0 0
    %1558 = vperm.xlu0 %1557, %v1555
    %v1559 = vpop.permute.xlu0 %1558
    %vm1561 = vcmask 130048
    %v1563 = vsel %vm1561, %v1554, 0
    %1565 = vmatprep.subr.mxu0 0.0
    %1566 = vmatpush1.msra.mxu0 0.0
    %1567 = vmatprep.subr.mxu0 0.0
    %1568 = vmatpush1.msra.mxu0 0.0
    %1569 = vmatprep.subr.mxu0 0.0
    %1570 = vmatpush1.msra.mxu0 0.0
    %1571 = vmatprep.subr.mxu0 0.0
    %1572 = vmatpush1.msra.mxu0 0.0
    %1573 = vmatprep.subr.mxu0 0.0
    %1574 = vmatpush1.msra.mxu0 0.0
    %1575 = vmatprep.subr.mxu0 0.0
    %1576 = vmatpush1.msra.mxu0 0.0
    %1577 = vmatprep.subr.mxu0 0.0
    %1578 = vmatpush1.msra.mxu0 0.0
    %1579 = vmatprep.subr.mxu0 0.0
    %1580 = vmatpush1.msra.mxu0 0.0
    %1581 = vmatprep.subr.mxu0 0.0
    %1582 = vmatpush1.msra.mxu0 0.0
    %1583 = vmatprep.subr.mxu0 0.0
    %1584 = vmatpush1.msra.mxu0 0.0
    %1585 = vmatprep.subr.mxu0 0.0
    %1586 = vmatpush1.msra.mxu0 0.0
    %1587 = vmatprep.subr.mxu0 0.0
    %1588 = vmatpush1.msra.mxu0 0.0
    %1589 = vmatprep.subr.mxu0 0.0
    %1590 = vmatpush1.msra.mxu0 0.0
    %1591 = vmatprep.subr.mxu0 0.0
    %1592 = vmatpush1.msra.mxu0 0.0
    %1593 = vmatprep.subr.mxu0 %v1547
    %1594 = vmatpush1.msra.mxu0 %v1546
    %1595 = vmatprep.subr.mxu0 %v1539
    %1596 = vmatpush1.msra.mxu0 %v1538
    %1597 = vmatprep.subr.mxu0 0.0
    %1598 = vmatpush2.msra.mxu0 0.0
    %1599 = vmatprep.subr.mxu0 0.0
    %1600 = vmatpush2.msra.mxu0 0.0
    %1601 = vmatprep.subr.mxu0 0.0
    %1602 = vmatpush2.msra.mxu0 0.0
    %1603 = vmatprep.subr.mxu0 0.0
    %1604 = vmatpush2.msra.mxu0 0.0
    %1605 = vmatprep.subr.mxu0 0.0
    %1606 = vmatpush2.msra.mxu0 0.0
    %1607 = vmatprep.subr.mxu0 0.0
    %1608 = vmatpush2.msra.mxu0 0.0
    %1609 = vmatprep.subr.mxu0 0.0
    %1610 = vmatpush2.msra.mxu0 0.0
    %1611 = vmatprep.subr.mxu0 0.0
    %1612 = vmatpush2.msra.mxu0 0.0
    %1613 = vmatprep.subr.mxu0 0.0
    %1614 = vmatpush2.msra.mxu0 0.0
    %1615 = vmatprep.subr.mxu0 0.0
    %1616 = vmatpush2.msra.mxu0 0.0
    %1617 = vmatprep.subr.mxu0 0.0
    %1618 = vmatpush2.msra.mxu0 0.0
    %1619 = vmatprep.subr.mxu0 0.0
    %1620 = vmatpush2.msra.mxu0 0.0
    %1621 = vmatprep.subr.mxu0 0.0
    %1622 = vmatpush2.msra.mxu0 0.0
    %1623 = vmatprep.subr.mxu0 0.0
    %1624 = vmatpush2.msra.mxu0 0.0
    %1625 = vmatprep.subr.mxu0 0.0
    %1626 = vmatpush2.msra.mxu0 0.0
    %1627 = vmatprep.subr.mxu0 0.0
    %1628 = vmatpush2.msra.mxu0 0.0
    %1629 = vmatprep.mubr.f32.mxu0 0.0
    %1630 = vmatmul.mubr.f32.gmra.mxu0 %v1563
    %v1631 = vpop.f32.mrf.mxu0
    %v1632 = vadd.f32 %v1559, %v1631
    %v1633 = vpop.f32.mrf.mxu0
    %v1634 = vadd.f32 %v1559, %v1633
    %1635 = vdwg.mxu0
    %1636 = vmatprep.subr.mxu0 0.0
    %1637 = vmatpush1.msra.mxu0 0.0
    %1638 = vmatprep.subr.mxu0 0.0
    %1639 = vmatpush1.msra.mxu0 0.0
    %1640 = vmatprep.subr.mxu0 0.0
    %1641 = vmatpush1.msra.mxu0 0.0
    %1642 = vmatprep.subr.mxu0 0.0
    %1643 = vmatpush1.msra.mxu0 0.0
    %1644 = vmatprep.subr.mxu0 0.0
    %1645 = vmatpush1.msra.mxu0 0.0
    %1646 = vmatprep.subr.mxu0 0.0
    %1647 = vmatpush1.msra.mxu0 0.0
    %1648 = vmatprep.subr.mxu0 0.0
    %1649 = vmatpush1.msra.mxu0 0.0
    %1650 = vmatprep.subr.mxu0 0.0
    %1651 = vmatpush1.msra.mxu0 0.0
    %1652 = vmatprep.subr.mxu0 0.0
    %1653 = vmatpush1.msra.mxu0 0.0
    %1654 = vmatprep.subr.mxu0 0.0
    %1655 = vmatpush1.msra.mxu0 0.0
    %1656 = vmatprep.subr.mxu0 0.0
    %1657 = vmatpush1.msra.mxu0 0.0
    %1658 = vmatprep.subr.mxu0 0.0
    %1659 = vmatpush1.msra.mxu0 0.0
    %1660 = vmatprep.subr.mxu0 0.0
    %1661 = vmatpush1.msra.mxu0 0.0
    %1662 = vmatprep.subr.mxu0 0.0
    %1663 = vmatpush1.msra.mxu0 0.0
    %1664 = vmatprep.subr.mxu0 %v1549
    %1665 = vmatpush1.msra.mxu0 %v1548
    %1666 = vmatprep.subr.mxu0 %v1541
    %1667 = vmatpush1.msra.mxu0 %v1540
    %1668 = vmatprep.subr.mxu0 0.0
    %1669 = vmatpush2.msra.mxu0 0.0
    %1670 = vmatprep.subr.mxu0 0.0
    %1671 = vmatpush2.msra.mxu0 0.0
    %1672 = vmatprep.subr.mxu0 0.0
    %1673 = vmatpush2.msra.mxu0 0.0
    %1674 = vmatprep.subr.mxu0 0.0
    %1675 = vmatpush2.msra.mxu0 0.0
    %1676 = vmatprep.subr.mxu0 0.0
    %1677 = vmatpush2.msra.mxu0 0.0
    %1678 = vmatprep.subr.mxu0 0.0
    %1679 = vmatpush2.msra.mxu0 0.0
    %1680 = vmatprep.subr.mxu0 0.0
    %1681 = vmatpush2.msra.mxu0 0.0
    %1682 = vmatprep.subr.mxu0 0.0
    %1683 = vmatpush2.msra.mxu0 0.0
    %1684 = vmatprep.subr.mxu0 0.0
    %1685 = vmatpush2.msra.mxu0 0.0
    %1686 = vmatprep.subr.mxu0 0.0
    %1687 = vmatpush2.msra.mxu0 0.0
    %1688 = vmatprep.subr.mxu0 0.0
    %1689 = vmatpush2.msra.mxu0 0.0
    %1690 = vmatprep.subr.mxu0 0.0
    %1691 = vmatpush2.msra.mxu0 0.0
    %1692 = vmatprep.subr.mxu0 0.0
    %1693 = vmatpush2.msra.mxu0 0.0
    %1694 = vmatprep.subr.mxu0 0.0
    %1695 = vmatpush2.msra.mxu0 0.0
    %1696 = vmatprep.subr.mxu0 0.0
    %1697 = vmatpush2.msra.mxu0 0.0
    %1698 = vmatprep.subr.mxu0 0.0
    %1699 = vmatpush2.msra.mxu0 0.0
    %1700 = vmatprep.mubr.f32.mxu0 0.0
    %1701 = vmatmul.mubr.f32.gmra.mxu0 %v1563
    %v1702 = vpop.f32.mrf.mxu0
    %v1703 = vadd.f32 %v1559, %v1702
    %v1704 = vpop.f32.mrf.mxu0
    %v1705 = vadd.f32 %v1559, %v1704
    %1706 = vdwg.mxu0
    %1707 = vmatprep.subr.mxu0 0.0
    %1708 = vmatpush1.msra.mxu0 0.0
    %1709 = vmatprep.subr.mxu0 0.0
    %1710 = vmatpush1.msra.mxu0 0.0
    %1711 = vmatprep.subr.mxu0 0.0
    %1712 = vmatpush1.msra.mxu0 0.0
    %1713 = vmatprep.subr.mxu0 0.0
    %1714 = vmatpush1.msra.mxu0 0.0
    %1715 = vmatprep.subr.mxu0 0.0
    %1716 = vmatpush1.msra.mxu0 0.0
    %1717 = vmatprep.subr.mxu0 0.0
    %1718 = vmatpush1.msra.mxu0 0.0
    %1719 = vmatprep.subr.mxu0 0.0
    %1720 = vmatpush1.msra.mxu0 0.0
    %1721 = vmatprep.subr.mxu0 0.0
    %1722 = vmatpush1.msra.mxu0 0.0
    %1723 = vmatprep.subr.mxu0 0.0
    %1724 = vmatpush1.msra.mxu0 0.0
    %1725 = vmatprep.subr.mxu0 0.0
    %1726 = vmatpush1.msra.mxu0 0.0
    %1727 = vmatprep.subr.mxu0 0.0
    %1728 = vmatpush1.msra.mxu0 0.0
    %1729 = vmatprep.subr.mxu0 0.0
    %1730 = vmatpush1.msra.mxu0 0.0
    %1731 = vmatprep.subr.mxu0 0.0
    %1732 = vmatpush1.msra.mxu0 0.0
    %1733 = vmatprep.subr.mxu0 0.0
    %1734 = vmatpush1.msra.mxu0 0.0
    %1735 = vmatprep.subr.mxu0 %v1551
    %1736 = vmatpush1.msra.mxu0 %v1550
    %1737 = vmatprep.subr.mxu0 %v1543
    %1738 = vmatpush1.msra.mxu0 %v1542
    %1739 = vmatprep.subr.mxu0 0.0
    %1740 = vmatpush2.msra.mxu0 0.0
    %1741 = vmatprep.subr.mxu0 0.0
    %1742 = vmatpush2.msra.mxu0 0.0
    %1743 = vmatprep.subr.mxu0 0.0
    %1744 = vmatpush2.msra.mxu0 0.0
    %1745 = vmatprep.subr.mxu0 0.0
    %1746 = vmatpush2.msra.mxu0 0.0
    %1747 = vmatprep.subr.mxu0 0.0
    %1748 = vmatpush2.msra.mxu0 0.0
    %1749 = vmatprep.subr.mxu0 0.0
    %1750 = vmatpush2.msra.mxu0 0.0
    %1751 = vmatprep.subr.mxu0 0.0
    %1752 = vmatpush2.msra.mxu0 0.0
    %1753 = vmatprep.subr.mxu0 0.0
    %1754 = vmatpush2.msra.mxu0 0.0
    %1755 = vmatprep.subr.mxu0 0.0
    %1756 = vmatpush2.msra.mxu0 0.0
    %1757 = vmatprep.subr.mxu0 0.0
    %1758 = vmatpush2.msra.mxu0 0.0
    %1759 = vmatprep.subr.mxu0 0.0
    %1760 = vmatpush2.msra.mxu0 0.0
    %1761 = vmatprep.subr.mxu0 0.0
    %1762 = vmatpush2.msra.mxu0 0.0
    %1763 = vmatprep.subr.mxu0 0.0
    %1764 = vmatpush2.msra.mxu0 0.0
    %1765 = vmatprep.subr.mxu0 0.0
    %1766 = vmatpush2.msra.mxu0 0.0
    %1767 = vmatprep.subr.mxu0 0.0
    %1768 = vmatpush2.msra.mxu0 0.0
    %1769 = vmatprep.subr.mxu0 0.0
    %1770 = vmatpush2.msra.mxu0 0.0
    %1771 = vmatprep.mubr.f32.mxu0 0.0
    %1772 = vmatmul.mubr.f32.gmra.mxu0 %v1563
    %v1773 = vpop.f32.mrf.mxu0
    %v1774 = vadd.f32 %v1559, %v1773
    %v1775 = vpop.f32.mrf.mxu0
    %v1776 = vadd.f32 %v1559, %v1775
    %1777 = vdwg.mxu0
    %1778 = vmatprep.subr.mxu0 0.0
    %1779 = vmatpush1.msra.mxu0 0.0
    %1780 = vmatprep.subr.mxu0 0.0
    %1781 = vmatpush1.msra.mxu0 0.0
    %1782 = vmatprep.subr.mxu0 0.0
    %1783 = vmatpush1.msra.mxu0 0.0
    %1784 = vmatprep.subr.mxu0 0.0
    %1785 = vmatpush1.msra.mxu0 0.0
    %1786 = vmatprep.subr.mxu0 0.0
    %1787 = vmatpush1.msra.mxu0 0.0
    %1788 = vmatprep.subr.mxu0 0.0
    %1789 = vmatpush1.msra.mxu0 0.0
    %1790 = vmatprep.subr.mxu0 0.0
    %1791 = vmatpush1.msra.mxu0 0.0
    %1792 = vmatprep.subr.mxu0 0.0
    %1793 = vmatpush1.msra.mxu0 0.0
    %1794 = vmatprep.subr.mxu0 0.0
    %1795 = vmatpush1.msra.mxu0 0.0
    %1796 = vmatprep.subr.mxu0 0.0
    %1797 = vmatpush1.msra.mxu0 0.0
    %1798 = vmatprep.subr.mxu0 0.0
    %1799 = vmatpush1.msra.mxu0 0.0
    %1800 = vmatprep.subr.mxu0 0.0
    %1801 = vmatpush1.msra.mxu0 0.0
    %1802 = vmatprep.subr.mxu0 0.0
    %1803 = vmatpush1.msra.mxu0 0.0
    %1804 = vmatprep.subr.mxu0 0.0
    %1805 = vmatpush1.msra.mxu0 0.0
    %1806 = vmatprep.subr.mxu0 %v1553
    %1807 = vmatpush1.msra.mxu0 %v1552
    %1808 = vmatprep.subr.mxu0 %v1545
    %1809 = vmatpush1.msra.mxu0 %v1544
    %1810 = vmatprep.subr.mxu0 0.0
    %1811 = vmatpush2.msra.mxu0 0.0
    %1812 = vmatprep.subr.mxu0 0.0
    %1813 = vmatpush2.msra.mxu0 0.0
    %1814 = vmatprep.subr.mxu0 0.0
    %1815 = vmatpush2.msra.mxu0 0.0
    %1816 = vmatprep.subr.mxu0 0.0
    %1817 = vmatpush2.msra.mxu0 0.0
    %1818 = vmatprep.subr.mxu0 0.0
    %1819 = vmatpush2.msra.mxu0 0.0
    %1820 = vmatprep.subr.mxu0 0.0
    %1821 = vmatpush2.msra.mxu0 0.0
    %1822 = vmatprep.subr.mxu0 0.0
    %1823 = vmatpush2.msra.mxu0 0.0
    %1824 = vmatprep.subr.mxu0 0.0
    %1825 = vmatpush2.msra.mxu0 0.0
    %1826 = vmatprep.subr.mxu0 0.0
    %1827 = vmatpush2.msra.mxu0 0.0
    %1828 = vmatprep.subr.mxu0 0.0
    %1829 = vmatpush2.msra.mxu0 0.0
    %1830 = vmatprep.subr.mxu0 0.0
    %1831 = vmatpush2.msra.mxu0 0.0
    %1832 = vmatprep.subr.mxu0 0.0
    %1833 = vmatpush2.msra.mxu0 0.0
    %1834 = vmatprep.subr.mxu0 0.0
    %1835 = vmatpush2.msra.mxu0 0.0
    %1836 = vmatprep.subr.mxu0 0.0
    %1837 = vmatpush2.msra.mxu0 0.0
    %1838 = vmatprep.subr.mxu0 0.0
    %1839 = vmatpush2.msra.mxu0 0.0
    %1840 = vmatprep.subr.mxu0 0.0
    %1841 = vmatpush2.msra.mxu0 0.0
    %1842 = vmatprep.mubr.f32.mxu0 0.0
    %1843 = vmatmul.mubr.f32.gmra.mxu0 %v1563
    %v1844 = vpop.f32.mrf.mxu0
    %v1845 = vadd.f32 %v1559, %v1844
    %v1846 = vpop.f32.mrf.mxu0
    %v1847 = vadd.f32 %v1559, %v1846
    %1848 = vdwg.mxu0
    %v1849 = vlaneseq
    %v1850 = vshrl.u32 %v1849, 7
    %vm1851 = vcmp.eq.s32.totalorder %v1850, 0
    %v1852 = vtanh.pop %v1632
    %v1853 = vtanh.pop %v1634
    %v1854 = vtanh.pop %v1703
    %v1855 = vtanh.pop %v1705
    %v1856 = vtanh.pop %v1774
    %v1857 = vtanh.pop %v1776
    %v1858 = vtanh.pop %v1845
    %v1859 = vtanh.pop %v1847
    %v1860 = vmul.f32 %v1852, 2.0
    %v1861 = vmul.f32 %v1853, 2.0
    %v1862 = vmul.f32 %v1854, 2.0
    %v1863 = vmul.f32 %v1855, 2.0
    %v1864 = vmul.f32 %v1856, 2.0
    %v1865 = vmul.f32 %v1857, 2.0
    %v1866 = vmul.f32 %v1858, 2.0
    %v1867 = vmul.f32 %v1859, 2.0
    %v1868 = vmax.f32 %v1632, 0.0
    %v1869 = vmax.f32 %v1634, 0.0
    %v1870 = vmax.f32 %v1703, 0.0
    %v1871 = vmax.f32 %v1705, 0.0
    %v1872 = vmax.f32 %v1774, 0.0
    %v1873 = vmax.f32 %v1776, 0.0
    %v1874 = vmax.f32 %v1845, 0.0
    %v1875 = vmax.f32 %v1847, 0.0
    %vm1876 = vcmp.ne.f32.partialorder %v1632, %v1632
    %vm1877 = vcmp.ne.f32.partialorder %v1634, %v1634
    %vm1878 = vcmp.ne.f32.partialorder %v1703, %v1703
    %vm1879 = vcmp.ne.f32.partialorder %v1705, %v1705
    %vm1880 = vcmp.ne.f32.partialorder %v1774, %v1774
    %vm1881 = vcmp.ne.f32.partialorder %v1776, %v1776
    %vm1882 = vcmp.ne.f32.partialorder %v1845, %v1845
    %vm1883 = vcmp.ne.f32.partialorder %v1847, %v1847
    %v1884 = vadd.f32 %v1632, 0.0
    %v1885 = vadd.f32 %v1634, 0.0
    %v1886 = vadd.f32 %v1703, 0.0
    %v1887 = vadd.f32 %v1705, 0.0
    %v1888 = vadd.f32 %v1774, 0.0
    %v1889 = vadd.f32 %v1776, 0.0
    %v1890 = vadd.f32 %v1845, 0.0
    %v1891 = vadd.f32 %v1847, 0.0
    %v1892 = vand.u32 2147483647, %v1632
    %v1893 = vand.u32 2147483647, %v1634
    %v1894 = vand.u32 2147483647, %v1703
    %v1895 = vand.u32 2147483647, %v1705
    %v1896 = vand.u32 2147483647, %v1774
    %v1897 = vand.u32 2147483647, %v1776
    %v1898 = vand.u32 2147483647, %v1845
    %v1899 = vand.u32 2147483647, %v1847
    %v1900 = vsub.f32 0.0, %v1892
    %v1901 = vsub.f32 0.0, %v1893
    %v1902 = vsub.f32 0.0, %v1894
    %v1903 = vsub.f32 0.0, %v1895
    %v1904 = vsub.f32 0.0, %v1896
    %v1905 = vsub.f32 0.0, %v1897
    %v1906 = vsub.f32 0.0, %v1898
    %v1907 = vsub.f32 0.0, %v1899
    %v1908 = vmul.f32 %v1900, 1.442695
    %v1909 = vpow.pop %v1908
    %v1910 = vmul.f32 %v1901, 1.442695
    %v1911 = vpow.pop %v1910
    %v1912 = vmul.f32 %v1902, 1.442695
    %v1913 = vpow.pop %v1912
    %v1914 = vmul.f32 %v1903, 1.442695
    %v1915 = vpow.pop %v1914
    %v1916 = vmul.f32 %v1904, 1.442695
    %v1917 = vpow.pop %v1916
    %v1918 = vmul.f32 %v1905, 1.442695
    %v1919 = vpow.pop %v1918
    %v1920 = vmul.f32 %v1906, 1.442695
    %v1921 = vpow.pop %v1920
    %v1922 = vmul.f32 %v1907, 1.442695
    %v1923 = vpow.pop %v1922
    %v1924 = vadd.f32 %v1909, 1.0
    %v1925 = vlog2.pop %v1924
    %v1926 = vmul.f32 %v1925, 0.6931472
    %v1927 = vmul.f32 -0.5, %v1909
    %v1928 = vadd.f32 %v1927, 1.0
    %v1929 = vmul.f32 %v1928, %v1909
    %v1930 = vand.u32 2147483647, %v1909
    %vm1931 = vcmp.lt.f32.partialorder %v1930, 0.0004427343
    %v1932 = vsel %vm1931, %v1929, %v1926
    %v1933 = vadd.f32 %v1911, 1.0
    %v1934 = vlog2.pop %v1933
    %v1935 = vmul.f32 %v1934, 0.6931472
    %v1936 = vmul.f32 -0.5, %v1911
    %v1937 = vadd.f32 %v1936, 1.0
    %v1938 = vmul.f32 %v1937, %v1911
    %v1939 = vand.u32 2147483647, %v1911
    %vm1940 = vcmp.lt.f32.partialorder %v1939, 0.0004427343
    %v1941 = vsel %vm1940, %v1938, %v1935
    %v1942 = vadd.f32 %v1913, 1.0
    %v1943 = vlog2.pop %v1942
    %v1944 = vmul.f32 %v1943, 0.6931472
    %v1945 = vmul.f32 -0.5, %v1913
    %v1946 = vadd.f32 %v1945, 1.0
    %v1947 = vmul.f32 %v1946, %v1913
    %v1948 = vand.u32 2147483647, %v1913
    %vm1949 = vcmp.lt.f32.partialorder %v1948, 0.0004427343
    %v1950 = vsel %vm1949, %v1947, %v1944
    %v1951 = vadd.f32 %v1915, 1.0
    %v1952 = vlog2.pop %v1951
    %v1953 = vmul.f32 %v1952, 0.6931472
    %v1954 = vmul.f32 -0.5, %v1915
    %v1955 = vadd.f32 %v1954, 1.0
    %v1956 = vmul.f32 %v1955, %v1915
    %v1957 = vand.u32 2147483647, %v1915
    %vm1958 = vcmp.lt.f32.partialorder %v1957, 0.0004427343
    %v1959 = vsel %vm1958, %v1956, %v1953
    %v1960 = vadd.f32 %v1917, 1.0
    %v1961 = vlog2.pop %v1960
    %v1962 = vmul.f32 %v1961, 0.6931472
    %v1963 = vmul.f32 -0.5, %v1917
    %v1964 = vadd.f32 %v1963, 1.0
    %v1965 = vmul.f32 %v1964, %v1917
    %v1966 = vand.u32 2147483647, %v1917
    %vm1967 = vcmp.lt.f32.partialorder %v1966, 0.0004427343
    %v1968 = vsel %vm1967, %v1965, %v1962
    %v1969 = vadd.f32 %v1919, 1.0
    %v1970 = vlog2.pop %v1969
    %v1971 = vmul.f32 %v1970, 0.6931472
    %v1972 = vmul.f32 -0.5, %v1919
    %v1973 = vadd.f32 %v1972, 1.0
    %v1974 = vmul.f32 %v1973, %v1919
    %v1975 = vand.u32 2147483647, %v1919
    %vm1976 = vcmp.lt.f32.partialorder %v1975, 0.0004427343
    %v1977 = vsel %vm1976, %v1974, %v1971
    %v1978 = vadd.f32 %v1921, 1.0
    %v1979 = vlog2.pop %v1978
    %v1980 = vmul.f32 %v1979, 0.6931472
    %v1981 = vmul.f32 -0.5, %v1921
    %v1982 = vadd.f32 %v1981, 1.0
    %v1983 = vmul.f32 %v1982, %v1921
    %v1984 = vand.u32 2147483647, %v1921
    %vm1985 = vcmp.lt.f32.partialorder %v1984, 0.0004427343
    %v1986 = vsel %vm1985, %v1983, %v1980
    %v1987 = vadd.f32 %v1923, 1.0
    %v1988 = vlog2.pop %v1987
    %v1989 = vmul.f32 %v1988, 0.6931472
    %v1990 = vmul.f32 -0.5, %v1923
    %v1991 = vadd.f32 %v1990, 1.0
    %v1992 = vmul.f32 %v1991, %v1923
    %v1993 = vand.u32 2147483647, %v1923
    %vm1994 = vcmp.lt.f32.partialorder %v1993, 0.0004427343
    %v1995 = vsel %vm1994, %v1992, %v1989
    %v1996 = vadd.f32 %v1868, %v1932
    %v1997 = vadd.f32 %v1869, %v1941
    %v1998 = vadd.f32 %v1870, %v1950
    %v1999 = vadd.f32 %v1871, %v1959
    %v2000 = vadd.f32 %v1872, %v1968
    %v2001 = vadd.f32 %v1873, %v1977
    %v2002 = vadd.f32 %v1874, %v1986
    %v2003 = vadd.f32 %v1875, %v1995
    %v2004 = vsel %vm1876, %v1884, %v1996
    %v2005 = vsel %vm1877, %v1885, %v1997
    %v2006 = vsel %vm1878, %v1886, %v1998
    %v2007 = vsel %vm1879, %v1887, %v1999
    %v2008 = vsel %vm1880, %v1888, %v2000
    %v2009 = vsel %vm1881, %v1889, %v2001
    %v2010 = vsel %vm1882, %v1890, %v2002
    %v2011 = vsel %vm1883, %v1891, %v2003
    %v2012 = vsel %vm1851, %v1860, %v2004
    %v2013 = vsel %vm1851, %v1861, %v2005
    %v2014 = vsel %vm1851, %v1862, %v2006
    %v2015 = vsel %vm1851, %v1863, %v2007
    %v2016 = vsel %vm1851, %v1864, %v2008
    %v2017 = vsel %vm1851, %v1865, %v2009
    %v2018 = vsel %vm1851, %v1866, %v2010
    %v2019 = vsel %vm1851, %v1867, %v2011
    %v2028 = vcombine.low %v2012, %v2013
    %v2029 = vcombine.low %v2014, %v2015
    %v2031 = vunpack.c.l.s4 1983009808
    %v2032 = vunpack.c.0.s8 %v2031
    %v2033 = vlaneseq
    %v2034 = vshrl.u32 %v2033, 7
    %v2035 = vsub.s32 %v2032, %v2034
    %v2036 = vrot.slane %v2028, %v2035
    %v2038 = vunpack.c.l.s4 1983009808
    %v2039 = vunpack.c.0.s8 %v2038
    %v2040 = vlaneseq
    %v2041 = vshrl.u32 %v2040, 7
    %v2042 = vsub.s32 %v2039, %v2041
    %v2043 = vrot.slane %v2029, %v2042
    %v2044 = vcombine.low %v2036, %v2043
    %v2045 = vcombine.low %v2016, %v2017
    %v2046 = vcombine.low %v2018, %v2019
    %v2048 = vunpack.c.l.s4 1983009808
    %v2049 = vunpack.c.0.s8 %v2048
    %v2050 = vlaneseq
    %v2051 = vshrl.u32 %v2050, 7
    %v2052 = vsub.s32 %v2049, %v2051
    %v2053 = vrot.slane %v2045, %v2052
    %v2055 = vunpack.c.l.s4 1983009808
    %v2056 = vunpack.c.0.s8 %v2055
    %v2057 = vlaneseq
    %v2058 = vshrl.u32 %v2057, 7
    %v2059 = vsub.s32 %v2056, %v2058
    %v2060 = vrot.slane %v2046, %v2059
    %v2061 = vcombine.low %v2053, %v2060
    %2064 = vst [vmem:[%s4] sm:$0xff] %v2044
    %2065 = vst [vmem:[%s4 + $0x8] sm:$0xff] %v2061
    // Predicated region
    $region18: #{reinforce_forward.2} parent=1 // pred_check
      _
    $region19: #{reinforce_forward.2} parent=1 // pred_check_branch
      %2067 = sbr.rel (0) target = $region21
    $region20: #{reinforce_forward.2} parent=1 // pred_region
      _
    $region21: #{reinforce_forward.2} parent=1 // pred_fallthru
      _
    // Predicated region
    $region22: #{reinforce_forward.2} parent=1 // pred_check
      _
    $region23: #{reinforce_forward.2} parent=1 // pred_check_branch
      %2069 = sbr.rel (0) target = $region25
    $region24: #{reinforce_forward.2} parent=1 // pred_region
      _
    $region25: #{reinforce_forward.2} parent=1 // pred_fallthru
      _
    %2070 = vsyncpa [#allocation8], 1

</llo_original>
